<compile_context>
chip_gen: v7x
topology: tpu7x:2x2x1
jax: 0.10.0
libtpu: 0.0.40
codegen_flags: <defaults>
</compile_context>

<pallas_src>
import functools
import math

import jax
import jax.numpy as jnp
from jax import lax
from jax.experimental import pallas as pl
from jax.experimental.pallas import tpu as pltpu


def _attn_kernel(x_ref, wqkv_ref, wo_ref, cos_ref, sin_ref, o_ref, *,
                 n_heads: int, head_dim: int):
    """One batch element per grid step; heads batched inside (no Python head loop)."""
    H, hd = n_heads, head_dim
    T = x_ref.shape[1]
    C = x_ref.shape[2]
    eps = 1e-12                                             # F.normalize default eps

    # ---- fused QKV (+ pre-rotated q/k) projection: one (T,C)@(C,5C) MXU pass.
    x = x_ref[0]                                            # (T, C) bf16
    qkv = jnp.dot(x, wqkv_ref[...],
                  preferred_element_type=jnp.float32)       # (T, 5C) fp32

    cos_t = cos_ref[...]                                    # (T, C) fp32 (sqk folded)
    sin_t = sin_ref[...]                                    # (T, C) fp32 (signed, sqk folded)

    # ---- RoPE + sqk scaling on the merged lane-dense (T, C) layout.
    #      columns: [q | rot_half(q) | k | rot_half(k) | v], all 128-aligned slices.
    q = qkv[:, 0 * C:1 * C] * cos_t + qkv[:, 1 * C:2 * C] * sin_t
    k = qkv[:, 2 * C:3 * C] * cos_t + qkv[:, 3 * C:4 * C] * sin_t
    v = qkv[:, 4 * C:5 * C]

    # ---- split heads (T, C) -> (H, T, hd) for the batched score matmuls.
    def split_heads(t):
        return jnp.transpose(t.reshape(T, H, hd), (1, 0, 2)).astype(jnp.bfloat16)

    q_h, k_h, v_h = split_heads(q), split_heads(k), split_heads(v)

    # ---- causal attention: heads batched, fp32 accumulation.
    s = jnp.einsum('hqd,hkd->hqk', q_h, k_h,
                   preferred_element_type=jnp.float32)      # (H, T, T)
    row = lax.broadcasted_iota(jnp.int32, (T, T), 0)
    col = lax.broadcasted_iota(jnp.int32, (T, T), 1)
    s = jnp.where(col <= row, s, -1e30)                     # finite mask value (NaN-safe)

    m = jnp.max(s, axis=-1, keepdims=True)
    p = jnp.exp(s - m)                                      # unnormalized probs, fp32
    denom = jnp.sum(p, axis=-1, keepdims=True)              # (H, T, 1)

    att = jnp.einsum('hqk,hkd->hqd', p.astype(jnp.bfloat16), v_h,
                     preferred_element_type=jnp.float32)    # (H, T, hd) fp32
    att = att * pl.reciprocal(denom, approx=True)           # normalize after p@v (EUP)

    # ---- merge heads -> (T, C) and run o_proj as a single K=C matmul.
    att_m = jnp.transpose(att, (1, 0, 2)).reshape(T, C).astype(jnp.bfloat16)
    o = jnp.dot(att_m, wo_ref[...],
                preferred_element_type=jnp.float32)         # (T, C) fp32

    # ---- F.normalize(o, p=2, dim=-1) == o * rsqrt(max(||o||^2, eps^2))
    ss = jnp.sum(o * o, axis=-1, keepdims=True)
    o_ref[0] = (o * lax.rsqrt(jnp.maximum(ss, eps * eps))).astype(o_ref.dtype)


def normalized_causal_self_attention(x, wqkv_packed, wo_t, cos_t, sin_t, *, n_heads: int):
    """x: (B,T,C) fp32; wqkv_packed: (C,5C) bf16; wo_t: (C,C) bf16;
    cos_t/sin_t: (T,C) fp32 RoPE tables with sqk*restore_scale*hd**0.25 folded in."""
    B, T, C = x.shape
    hd = C // n_heads
    kernel = functools.partial(_attn_kernel, n_heads=n_heads, head_dim=hd)

    return pl.pallas_call(
        kernel,
        out_shape=jax.ShapeDtypeStruct((B, T, C), x.dtype),
        grid=(B,),
        in_specs=[
            pl.BlockSpec((1, T, C), lambda b: (b, 0, 0)),               # x (bf16)
            # constant-index inputs: single-buffered (no pipelining benefit).
            pl.BlockSpec((C, 5 * C), lambda b: (0, 0),
                         pipeline_mode=pl.Buffered(1)),                  # packed QKV(+rot) w
            pl.BlockSpec((C, C), lambda b: (0, 0),
                         pipeline_mode=pl.Buffered(1)),                  # o_proj w (transposed)
            pl.BlockSpec((T, C), lambda b: (0, 0),
                         pipeline_mode=pl.Buffered(1)),                  # cos table
            pl.BlockSpec((T, C), lambda b: (0, 0),
                         pipeline_mode=pl.Buffered(1)),                  # sin table
        ],
        out_specs=pl.BlockSpec((1, T, C), lambda b: (b, 0, 0)),
        compiler_params=pltpu.CompilerParams(
            dimension_semantics=("parallel",),
            vmem_limit_bytes=32 * 1024 * 1024),
    )(x.astype(jnp.bfloat16), wqkv_packed, wo_t, cos_t, sin_t)


def pack_params(wq, wk, wv, wo, cos, sin, sqk_actual, *, n_heads: int):
    """Host-side repack: fused QKV(+rotate-half) weights, transposed o_proj weight,
    and full-width RoPE tables with sqk*restore_scale*head_dim**0.25 folded in."""
    dim = wq.shape[0]
    hd = dim // n_heads
    hd2 = hd // 2
    T = cos.shape[0]

    def rot_half_rows(w):   # rows rolled by hd/2 within each head block
        return jnp.roll(w.reshape(n_heads, hd, dim), hd2, axis=1).reshape(dim, dim)

    # x @ wqkv gives [q | rot_half(q) | k | rot_half(k) | v] in merged head layout.
    wqkv = jnp.concatenate(
        [wq.T, rot_half_rows(wq).T, wk.T, rot_half_rows(wk).T, wv.T],
        axis=1).astype(jnp.bfloat16)                                    # (C, 5C)
    wo_t = wo.T.astype(jnp.bfloat16)                                    # (C, C)

    # RoPE tables: y = t*cos_t + rot_half(t)*sin_t reproduces
    # (real*cos - imag*sin | real*sin + imag*cos); sqk & sqrt(hd) score scale folded.
    sqk_eff = (sqk_actual * hd ** 0.25).reshape(n_heads, hd)            # (H, hd)
    cos_head = jnp.concatenate([cos, cos], axis=1)                      # (T, hd)
    sin_head = jnp.concatenate([-sin, sin], axis=1)                     # (T, hd)
    cos_t = (cos_head[:, None, :] * sqk_eff[None]).reshape(T, dim)      # (T, C)
    sin_t = (sin_head[:, None, :] * sqk_eff[None]).reshape(T, dim)      # (T, C)
    return wqkv, wo_t, cos_t.astype(jnp.float32), sin_t.astype(jnp.float32)


def _reference(x, wq, wk, wv, wo, cos, sin, sqk_actual, *, n_heads):
    """Pure-JAX fp32 reference mirroring the PyTorch forward (no cache, dropout=0)."""
    B, T, C = x.shape
    hd = C // n_heads
    hd2 = hd // 2

    def proj(w):   # nn.Linear(bias=False): x @ w.T, then split heads
        return (x @ w.T).reshape(B, T, n_heads, hd).transpose(0, 2, 1, 3)

    q, k, v = proj(wq), proj(wk), proj(wv)

    def rope(t):
        tr, ti = t[..., :hd2], t[..., hd2:]
        return jnp.concatenate([tr * cos - ti * sin, tr * sin + ti * cos], axis=-1)

    sqk = sqk_actual.reshape(1, n_heads, 1, hd)
    q = rope(q) * sqk
    k = rope(k) * sqk

    s = jnp.einsum('bhqd,bhkd->bhqk', q, k) * (hd ** 0.5)
    mask = jnp.tril(jnp.ones((T, T), bool))
    s = jnp.where(mask, s, -jnp.inf)
    p = jax.nn.softmax(s, axis=-1)
    o = jnp.einsum('bhqk,bhkd->bhqd', p, v).transpose(0, 2, 1, 3).reshape(B, T, C)
    o = o @ wo.T
    nrm = jnp.sqrt(jnp.sum(o * o, axis=-1, keepdims=True))
    return o / jnp.maximum(nrm, 1e-12)


if __name__ == "__main__":
    # Small shapes consistent with the module; C = 128 keeps every block lane-dense.
    B, T, dim, n_heads = 2, 16, 128, 4
    head_dim = dim // n_heads          # 32
    rope_base = 10000

    key = jax.random.PRNGKey(0)
    kx, kq, kk, kv, ko = jax.random.split(key, 5)

    x = jax.random.normal(kx, (B, T, dim), jnp.float32)

    # nn.Linear(dim, dim, bias=False) weights, (out, in) layout like PyTorch.
    init_scale = 1.0 / math.sqrt(dim)
    wq = jax.random.uniform(kq, (dim, dim), jnp.float32, -init_scale, init_scale)
    wk = jax.random.uniform(kk, (dim, dim), jnp.float32, -init_scale, init_scale)
    wv = jax.random.uniform(kv, (dim, dim), jnp.float32, -init_scale, init_scale)
    wo = jax.random.uniform(ko, (dim, dim), jnp.float32, -init_scale, init_scale)

    # RotaryPositionEmbedding tables (offset = 0, head_dim features).
    positions = jnp.arange(T, dtype=jnp.float32)
    theta = 1.0 / (rope_base ** (jnp.arange(0, head_dim, 2, dtype=jnp.float32) / head_dim))
    pos_theta = positions[:, None] * theta[None, :]          # (T, head_dim//2)
    cos = jnp.cos(pos_theta)
    sin = jnp.sin(pos_theta)

    # sqk parameter as in __init__; actual_sqk = sqk * restore_scale.
    sqkscale = 1.0 / math.sqrt(dim)
    restore_scale_sqk = 1.0 / sqkscale
    sqk_param = jnp.ones((n_heads, 1, head_dim), jnp.float32) * sqkscale
    sqk_actual = sqk_param * restore_scale_sqk               # (H, 1, hd)

    # Host-side repack for the kernel (bf16 MXU operands, folded RoPE/scale tables).
    wqkv_packed, wo_t, cos_t, sin_t = pack_params(
        wq, wk, wv, wo, cos, sin, sqk_actual, n_heads=n_heads)

    out = normalized_causal_self_attention(
        x, wqkv_packed, wo_t, cos_t, sin_t, n_heads=n_heads)
    out = jax.block_until_ready(out)

    ref = _reference(x, wq, wk, wv, wo, cos, sin, sqk_actual, n_heads=n_heads)
    assert out.shape == (B, T, dim)
    # Tolerance accounts for bf16 MXU operands (and approx reciprocal) vs fp32 reference.
    max_err = float(jnp.max(jnp.abs(out - ref)))
    assert jnp.allclose(out, ref, atol=3e-2, rtol=3e-2), f"mismatch: max|diff|={max_err}"

    print("KERNEL_OK")
</pallas_src>

<mosaic_0001>
module attributes {stable_mosaic.version = 11 : i64} {
  func.func @_attn_kernel(%arg0: i32, %arg1: memref<1x16x128xbf16, #tpu.memory_space<vmem>>, %arg2: memref<128x640xbf16, #tpu.memory_space<vmem>>, %arg3: memref<128x128xbf16, #tpu.memory_space<vmem>>, %arg4: memref<16x128xf32, #tpu.memory_space<vmem>>, %arg5: memref<16x128xf32, #tpu.memory_space<vmem>>, %arg6: memref<1x16x128xf32, #tpu.memory_space<vmem>>) attributes {dimension_semantics = [#tpu.dimension_semantics<parallel>], iteration_bounds = array<i64: 2>, scalar_prefetch = 0 : i64, scratch_operands = 0 : i64, tpu.core_type = #tpu.core_type<tc>, window_params = [{transform_indices = @transform_0, window_bounds = array<i64: 1, 16, 128>}, {pipeline_mode = #tpu.pipeline_mode<synchronous>, transform_indices = @transform_1, window_bounds = array<i64: 128, 640>}, {pipeline_mode = #tpu.pipeline_mode<synchronous>, transform_indices = @transform_2, window_bounds = array<i64: 128, 128>}, {pipeline_mode = #tpu.pipeline_mode<synchronous>, transform_indices = @transform_3, window_bounds = array<i64: 16, 128>}, {pipeline_mode = #tpu.pipeline_mode<synchronous>, transform_indices = @transform_4, window_bounds = array<i64: 16, 128>}, {transform_indices = @transform_5, window_bounds = array<i64: 1, 16, 128>}]} {
    %c0 = arith.constant 0 : index
    %c0_0 = arith.constant 0 : index
    %c0_1 = arith.constant 0 : index
    %0 = vector.load %arg1[%c0, %c0_0, %c0_1] : memref<1x16x128xbf16, #tpu.memory_space<vmem>>, vector<1x16x128xbf16>
    %1 = vector.shape_cast %0 : vector<1x16x128xbf16> to vector<16x128xbf16>
    %c0_2 = arith.constant 0 : index
    %c0_3 = arith.constant 0 : index
    %2 = vector.load %arg2[%c0_2, %c0_3] : memref<128x640xbf16, #tpu.memory_space<vmem>>, vector<128x640xbf16>
    %cst = arith.constant dense<0.000000e+00> : vector<16x640xf32>
    %3 = tpu.matmul %1, %2, %cst {dimension_numbers = #tpu.dot_dimension_numbers<[1], [0], [0], [1], [0, 0, 1, 1], [], []>} : vector<16x128xbf16>, vector<128x640xbf16>, vector<16x640xf32> -> vector<16x640xf32>
    %c0_4 = arith.constant 0 : index
    %c0_5 = arith.constant 0 : index
    %4 = vector.load %arg4[%c0_4, %c0_5] : memref<16x128xf32, #tpu.memory_space<vmem>>, vector<16x128xf32>
    %c0_6 = arith.constant 0 : index
    %c0_7 = arith.constant 0 : index
    %5 = vector.load %arg5[%c0_6, %c0_7] : memref<16x128xf32, #tpu.memory_space<vmem>>, vector<16x128xf32>
    %6 = vector.extract_strided_slice %3 {offsets = [0, 0], sizes = [16, 128], strides = [1, 1]} : vector<16x640xf32> to vector<16x128xf32>
    %7 = arith.mulf %6, %4 : vector<16x128xf32>
    %8 = vector.extract_strided_slice %3 {offsets = [0, 128], sizes = [16, 128], strides = [1, 1]} : vector<16x640xf32> to vector<16x128xf32>
    %9 = arith.mulf %8, %5 : vector<16x128xf32>
    %10 = arith.addf %7, %9 : vector<16x128xf32>
    %11 = vector.extract_strided_slice %3 {offsets = [0, 256], sizes = [16, 128], strides = [1, 1]} : vector<16x640xf32> to vector<16x128xf32>
    %12 = arith.mulf %11, %4 : vector<16x128xf32>
    %13 = vector.extract_strided_slice %3 {offsets = [0, 384], sizes = [16, 128], strides = [1, 1]} : vector<16x640xf32> to vector<16x128xf32>
    %14 = arith.mulf %13, %5 : vector<16x128xf32>
    %15 = arith.addf %12, %14 : vector<16x128xf32>
    %16 = vector.extract_strided_slice %3 {offsets = [0, 512], sizes = [16, 128], strides = [1, 1]} : vector<16x640xf32> to vector<16x128xf32>
    %17 = vector.shape_cast %10 : vector<16x128xf32> to vector<16x4x32xf32>
    %18 = tpu.transpose %17, [1, 0, 2] : vector<16x4x32xf32> -> vector<4x16x32xf32>
    %19 = arith.truncf %18 : vector<4x16x32xf32> to vector<4x16x32xbf16>
    %20 = vector.shape_cast %15 : vector<16x128xf32> to vector<16x4x32xf32>
    %21 = tpu.transpose %20, [1, 0, 2] : vector<16x4x32xf32> -> vector<4x16x32xf32>
    %22 = arith.truncf %21 : vector<4x16x32xf32> to vector<4x16x32xbf16>
    %23 = vector.shape_cast %16 : vector<16x128xf32> to vector<16x4x32xf32>
    %24 = tpu.transpose %23, [1, 0, 2] : vector<16x4x32xf32> -> vector<4x16x32xf32>
    %25 = arith.truncf %24 : vector<4x16x32xf32> to vector<4x16x32xbf16>
    "tpu.trace_start"() <{level = 10 : i32, message = "hqd,hkd->hqk"}> : () -> ()
    %cst_8 = arith.constant dense<0.000000e+00> : vector<4x16x16xf32>
    %26 = tpu.matmul %19, %22, %cst_8 {dimension_numbers = #tpu.dot_dimension_numbers<[2], [2], [1], [1], [0, 0, 0, 1, 1, 1], [0], [0]>} : vector<4x16x32xbf16>, vector<4x16x32xbf16>, vector<4x16x16xf32> -> vector<4x16x16xf32>
    "tpu.trace_stop"() : () -> ()
    %27 = tpu.iota {dimensions = array<i32: 0>} : vector<16x16xi32>
    %28 = tpu.iota {dimensions = array<i32: 1>} : vector<16x16xi32>
    %29 = arith.cmpi sle, %28, %27 : vector<16x16xi32>
    %cst_9 = arith.constant -1.000000e+30 : f32
    %30 = vector.shape_cast %29 : vector<16x16xi1> to vector<1x16x16xi1>
    %31 = vector.broadcast %30 : vector<1x16x16xi1> to vector<4x16x16xi1>
    %32 = vector.broadcast %cst_9 : f32 to vector<4x16x16xf32>
    %33 = arith.select %31, %26, %32 : vector<4x16x16xi1>, vector<4x16x16xf32>
    %cst_10 = arith.constant dense<0xFF800000> : vector<4x16xf32>
    %34 = vector.multi_reduction <maximumf>, %33, %cst_10 [2] : vector<4x16x16xf32> to vector<4x16xf32>
    %35 = vector.shape_cast %34 : vector<4x16xf32> to vector<4x16x1xf32>
    %36 = vector.broadcast %35 : vector<4x16x1xf32> to vector<4x16x16xf32>
    %37 = arith.subf %33, %36 : vector<4x16x16xf32>
    %38 = math.exp %37 : vector<4x16x16xf32>
    %cst_11 = arith.constant dense<0.000000e+00> : vector<4x16xf32>
    %39 = vector.multi_reduction <add>, %38, %cst_11 [2] : vector<4x16x16xf32> to vector<4x16xf32>
    %40 = vector.shape_cast %39 : vector<4x16xf32> to vector<4x16x1xf32>
    %41 = arith.truncf %38 : vector<4x16x16xf32> to vector<4x16x16xbf16>
    "tpu.trace_start"() <{level = 10 : i32, message = "hqk,hkd->hqd"}> : () -> ()
    %cst_12 = arith.constant dense<0.000000e+00> : vector<4x16x32xf32>
    %42 = tpu.matmul %41, %25, %cst_12 {dimension_numbers = #tpu.dot_dimension_numbers<[2], [1], [1], [2], [0, 0, 0, 1, 1, 2], [0], [0]>} : vector<4x16x16xbf16>, vector<4x16x32xbf16>, vector<4x16x32xf32> -> vector<4x16x32xf32>
    "tpu.trace_stop"() : () -> ()
    %43 = tpu.reciprocal %40 {approx = true} : vector<4x16x1xf32> -> vector<4x16x1xf32>
    %44 = vector.broadcast %43 : vector<4x16x1xf32> to vector<4x16x32xf32>
    %45 = arith.mulf %42, %44 : vector<4x16x32xf32>
    %46 = tpu.transpose %45, [1, 0, 2] : vector<4x16x32xf32> -> vector<16x4x32xf32>
    %47 = vector.shape_cast %46 : vector<16x4x32xf32> to vector<16x128xf32>
    %48 = arith.truncf %47 : vector<16x128xf32> to vector<16x128xbf16>
    %c0_13 = arith.constant 0 : index
    %c0_14 = arith.constant 0 : index
    %49 = vector.load %arg3[%c0_13, %c0_14] : memref<128x128xbf16, #tpu.memory_space<vmem>>, vector<128x128xbf16>
    %cst_15 = arith.constant dense<0.000000e+00> : vector<16x128xf32>
    %50 = tpu.matmul %48, %49, %cst_15 {dimension_numbers = #tpu.dot_dimension_numbers<[1], [0], [0], [1], [0, 0, 1, 1], [], []>} : vector<16x128xbf16>, vector<128x128xbf16>, vector<16x128xf32> -> vector<16x128xf32>
    %51 = arith.mulf %50, %50 : vector<16x128xf32>
    %cst_16 = arith.constant dense<0.000000e+00> : vector<16xf32>
    %52 = vector.multi_reduction <add>, %51, %cst_16 [1] : vector<16x128xf32> to vector<16xf32>
    %53 = vector.shape_cast %52 : vector<16xf32> to vector<16x1xf32>
    %cst_17 = arith.constant 1.000000e-24 : f32
    %54 = vector.broadcast %cst_17 : f32 to vector<16x1xf32>
    %55 = arith.maximumf %53, %54 : vector<16x1xf32>
    %56 = math.rsqrt %55 : vector<16x1xf32>
    %57 = vector.broadcast %56 : vector<16x1xf32> to vector<16x128xf32>
    %58 = arith.mulf %50, %57 : vector<16x128xf32>
    %c0_18 = arith.constant 0 : index
    %c0_19 = arith.constant 0 : index
    %c0_20 = arith.constant 0 : index
    %59 = vector.load %arg6[%c0_18, %c0_19, %c0_20] : memref<1x16x128xf32, #tpu.memory_space<vmem>>, vector<1x16x128xf32>
    %60 = vector.shape_cast %59 : vector<1x16x128xf32> to vector<16x128xf32>
    %61 = vector.shape_cast %58 : vector<16x128xf32> to vector<1x16x128xf32>
    tpu.vector_store %arg6[%c0_18, %c0_19, %c0_20], %61 {strides = array<i32>} : memref<1x16x128xf32, #tpu.memory_space<vmem>>, vector<1x16x128xf32>,
    return
  }
  func.func @transform_0(%arg0: i32) -> (i32, i32, i32) {
    %c0_i32 = arith.constant 0 : i32
    %c0_i32_0 = arith.constant 0 : i32
    %c0_i32_1 = arith.constant 0 : i32
    return %arg0, %c0_i32, %c0_i32_0 : i32, i32, i32
  }
  func.func @transform_1(%arg0: i32) -> (i32, i32) {
    %c0_i32 = arith.constant 0 : i32
    %c0_i32_0 = arith.constant 0 : i32
    %c0_i32_1 = arith.constant 0 : i32
    return %c0_i32, %c0_i32_0 : i32, i32
  }
  func.func @transform_2(%arg0: i32) -> (i32, i32) {
    %c0_i32 = arith.constant 0 : i32
    %c0_i32_0 = arith.constant 0 : i32
    %c0_i32_1 = arith.constant 0 : i32
    return %c0_i32, %c0_i32_0 : i32, i32
  }
  func.func @transform_3(%arg0: i32) -> (i32, i32) {
    %c0_i32 = arith.constant 0 : i32
    %c0_i32_0 = arith.constant 0 : i32
    %c0_i32_1 = arith.constant 0 : i32
    return %c0_i32, %c0_i32_0 : i32, i32
  }
  func.func @transform_4(%arg0: i32) -> (i32, i32) {
    %c0_i32 = arith.constant 0 : i32
    %c0_i32_0 = arith.constant 0 : i32
    %c0_i32_1 = arith.constant 0 : i32
    return %c0_i32, %c0_i32_0 : i32, i32
  }
  func.func @transform_5(%arg0: i32) -> (i32, i32, i32) {
    %c0_i32 = arith.constant 0 : i32
    %c0_i32_0 = arith.constant 0 : i32
    %c0_i32_1 = arith.constant 0 : i32
    return %arg0, %c0_i32, %c0_i32_0 : i32, i32, i32
  }
}

</mosaic_0001>

<llo_original>
// kernel: tpu_custom_call.1
$region0: #{tpu_custom_call.1}
  #allocation0 [shape = 'u32[]', space=smem, size = 0x4, offset = 0x4, fixed_abs, tag = 'smem constant byte address 0x4 - core index']
  #allocation1 [shape = 'u32[144,128]{1,0:T(1,128)}', space=vmem, size = 0x12000, scoped, tag = 'internal scratch']
  %s0 = inlined_call_operand.hbm [shape: bf16[2,16,128], index: 0, kind: input, shape index: {}]
  %s1 = inlined_call_operand.hbm [shape: bf16[128,640], index: 1, kind: input, shape index: {}]
  %s2 = inlined_call_operand.hbm [shape: bf16[128,128], index: 2, kind: input, shape index: {}]
  %s3 = inlined_call_operand.hbm [shape: f32[16,128], index: 3, kind: input, shape index: {}]
  %s4 = inlined_call_operand.hbm [shape: f32[16,128], index: 4, kind: input, shape index: {}]
  %s5 = inlined_call_operand.hbm [shape: f32[2,16,128], index: 5, kind: output, shape index: {}]
  %s6 = sld [smem:[#allocation0]]
  $region73: #{tpu_custom_call.1} parent=0
    _
  %s8 = ssub.s32 1, %s6
  %s9 = scalar_select 0, %s8, %s6
  $region1: #{tpu_custom_call.1} parent=0
    #allocation2 [shape = 'u8[8192]{0}', space=vmem, size = 0x2000, scoped, tag = 'input window, operand 0']
    #allocation3 [shape = 's32[2]{0}', space=sflag, size = 0x8, scoped, tag = 'scoped memory for tpu_custom_call.1']
    #allocation4 [shape = 's32[2]{0}', space=sflag, size = 0x8, scoped, tag = 'scoped memory for tpu_custom_call.1']
    #allocation5 [shape = 'u8[163840]{0}', space=vmem, size = 0x28000, scoped, tag = 'input window, operand 1, single buffered']
    #allocation6 [shape = 's32[1]{0}', space=sflag, size = 0x4, scoped, tag = 'scoped memory for tpu_custom_call.1']
    #allocation7 [shape = 'u8[32768]{0}', space=vmem, size = 0x8000, scoped, tag = 'input window, operand 2, single buffered']
    #allocation8 [shape = 'u8[8192]{0}', space=vmem, size = 0x2000, scoped, tag = 'input window, operand 3, single buffered']
    #allocation9 [shape = 's32[1]{0}', space=sflag, size = 0x4, scoped, tag = 'scoped memory for tpu_custom_call.1']
    #allocation10 [shape = 'u8[8192]{0}', space=vmem, size = 0x2000, scoped, tag = 'input window, operand 4, single buffered']
    #allocation11 [shape = 'u8[16384]{0}', space=vmem, size = 0x4000, scoped, tag = 'output window, operand 0']
    %10 = vsyncpa [#allocation3], 0
    %s11 = scalar_lea.sflag [#allocation3], 1
    %12 = vsyncpa %s11, 0
    %13 = vsyncpa [#allocation6], 0
    %14 = vsyncpa [#allocation9], 0
    %15 = vsyncpa [#allocation4], 0
    %s16 = scalar_lea.sflag [#allocation4], 1
    %17 = vsyncpa %s16, 0
    loop: start=0, step=1, limit=4
    $region2: #{tpu_custom_call.1} parent=1 // loop_pre_header
      _
    $region3: #{tpu_custom_call.1} parent=1 // loop_header
      %s19 = sphi 0, %s23
      %p20 = scmp.ge.s32.totalorder %s19, 4
      %s29 = sphi 0, %s31
      %s32 = sphi 0, %s29
      %s33 = sphi 0, %s32
      %s49 = sphi 0, %s33
      %s53 = sphi 0, %s53
      %s55 = sphi 0, %s53
      %s56 = sphi 0, %s55
      %s70 = sphi 0, %s56
      %s74 = sphi 0, %s74
      %s76 = sphi 0, %s74
      %s77 = sphi 0, %s76
      %s91 = sphi 0, %s77
      %s95 = sphi 0, %s95
      %s97 = sphi 0, %s95
      %s98 = sphi 0, %s97
      %s112 = sphi 0, %s98
      %s116 = sphi 0, %s116
      %s118 = sphi 0, %s116
      %s119 = sphi 0, %s118
      %s133 = sphi 0, %s119
      %s139 = sphi 0, %s141
      %s142 = sphi 0, %s139
      %s143 = sphi 0, %s142
      %s159 = sphi 0, %s143
    $region4: #{tpu_custom_call.1} parent=1 // loop_header_branch
      %22 = sbr.rel (%p20) target = $region8
    $region5: #{tpu_custom_call.1} parent=1 // loop_body
      %s24 = ssub.s32 %s19, 1
      %s25 = ssub.s32 %s19, 2
      %s26 = sadd.s32 %s19, 1
      %s27 = ssub.s32 %s19, %s26
      %p28 = scmp.eq.s32.totalorder %s27, 0
      %s30 = sadd.s32 %s29, 1
      %s31 = scalar_select %p28, %s29, %s30
      %p34 = pneg %p28
      %p35 = scmp.eq.s32.totalorder %s19, 1
      %p36 = por %p34, %p35
      %p37 = scmp.ne.s32.totalorder %s29, %s32
      %p38 = scmp.eq.s32.totalorder %s19, 0
      %p39 = por %p37, %p38
      %p40 = scmp.ne.s32.totalorder %s29, %s32
      %p41 = scmp.eq.s32.totalorder %s24, 1
      %p42 = por %p40, %p41
      %p43 = scmp.ne.s32.totalorder %s32, %s33
      %p44 = scmp.eq.s32.totalorder %s24, 0
      %p45 = por %p43, %p44
      %p46 = scmp.ne.s32.totalorder %s32, %s33
      %p47 = scmp.eq.s32.totalorder %s25, 1
      %p48 = por %p46, %p47
      %p50 = scmp.ne.s32.totalorder %s33, %s49
      %p51 = scmp.eq.s32.totalorder %s25, 0
      %p52 = por %p50, %p51
      %s54 = sadd.s32 %s53, 1
      %p57 = scmp.eq.s32.totalorder %s19, 1
      %p58 = scmp.ne.s32.totalorder %s53, %s55
      %p59 = scmp.eq.s32.totalorder %s19, 0
      %p60 = por %p58, %p59
      %p61 = scmp.ne.s32.totalorder %s53, %s55
      %p62 = scmp.eq.s32.totalorder %s24, 1
      %p63 = por %p61, %p62
      %p64 = scmp.ne.s32.totalorder %s55, %s56
      %p65 = scmp.eq.s32.totalorder %s24, 0
      %p66 = por %p64, %p65
      %p67 = scmp.ne.s32.totalorder %s55, %s56
      %p68 = scmp.eq.s32.totalorder %s25, 1
      %p69 = por %p67, %p68
      %p71 = scmp.ne.s32.totalorder %s56, %s70
      %p72 = scmp.eq.s32.totalorder %s25, 0
      %p73 = por %p71, %p72
      %s75 = sadd.s32 %s74, 1
      %p78 = scmp.eq.s32.totalorder %s19, 1
      %p79 = scmp.ne.s32.totalorder %s74, %s76
      %p80 = scmp.eq.s32.totalorder %s19, 0
      %p81 = por %p79, %p80
      %p82 = scmp.ne.s32.totalorder %s74, %s76
      %p83 = scmp.eq.s32.totalorder %s24, 1
      %p84 = por %p82, %p83
      %p85 = scmp.ne.s32.totalorder %s76, %s77
      %p86 = scmp.eq.s32.totalorder %s24, 0
      %p87 = por %p85, %p86
      %p88 = scmp.ne.s32.totalorder %s76, %s77
      %p89 = scmp.eq.s32.totalorder %s25, 1
      %p90 = por %p88, %p89
      %p92 = scmp.ne.s32.totalorder %s77, %s91
      %p93 = scmp.eq.s32.totalorder %s25, 0
      %p94 = por %p92, %p93
      %s96 = sadd.s32 %s95, 1
      %p99 = scmp.eq.s32.totalorder %s19, 1
      %p100 = scmp.ne.s32.totalorder %s95, %s97
      %p101 = scmp.eq.s32.totalorder %s19, 0
      %p102 = por %p100, %p101
      %p103 = scmp.ne.s32.totalorder %s95, %s97
      %p104 = scmp.eq.s32.totalorder %s24, 1
      %p105 = por %p103, %p104
      %p106 = scmp.ne.s32.totalorder %s97, %s98
      %p107 = scmp.eq.s32.totalorder %s24, 0
      %p108 = por %p106, %p107
      %p109 = scmp.ne.s32.totalorder %s97, %s98
      %p110 = scmp.eq.s32.totalorder %s25, 1
      %p111 = por %p109, %p110
      %p113 = scmp.ne.s32.totalorder %s98, %s112
      %p114 = scmp.eq.s32.totalorder %s25, 0
      %p115 = por %p113, %p114
      %s117 = sadd.s32 %s116, 1
      %p120 = scmp.eq.s32.totalorder %s19, 1
      %p121 = scmp.ne.s32.totalorder %s116, %s118
      %p122 = scmp.eq.s32.totalorder %s19, 0
      %p123 = por %p121, %p122
      %p124 = scmp.ne.s32.totalorder %s116, %s118
      %p125 = scmp.eq.s32.totalorder %s24, 1
      %p126 = por %p124, %p125
      %p127 = scmp.ne.s32.totalorder %s118, %s119
      %p128 = scmp.eq.s32.totalorder %s24, 0
      %p129 = por %p127, %p128
      %p130 = scmp.ne.s32.totalorder %s118, %s119
      %p131 = scmp.eq.s32.totalorder %s25, 1
      %p132 = por %p130, %p131
      %p134 = scmp.ne.s32.totalorder %s119, %s133
      %p135 = scmp.eq.s32.totalorder %s25, 0
      %p136 = por %p134, %p135
      %s137 = ssub.s32 %s19, %s26
      %p138 = scmp.eq.s32.totalorder %s137, 0
      %s140 = sadd.s32 %s139, 1
      %s141 = scalar_select %p138, %s139, %s140
      %p144 = pneg %p138
      %p145 = scmp.eq.s32.totalorder %s19, 1
      %p146 = por %p144, %p145
      %p147 = scmp.ne.s32.totalorder %s139, %s142
      %p148 = scmp.eq.s32.totalorder %s19, 0
      %p149 = por %p147, %p148
      %p150 = scmp.ne.s32.totalorder %s139, %s142
      %p151 = scmp.eq.s32.totalorder %s24, 1
      %p152 = por %p150, %p151
      %p153 = scmp.ne.s32.totalorder %s142, %s143
      %p154 = scmp.eq.s32.totalorder %s24, 0
      %p155 = por %p153, %p154
      %p156 = scmp.ne.s32.totalorder %s142, %s143
      %p157 = scmp.eq.s32.totalorder %s25, 1
      %p158 = por %p156, %p157
      %p160 = scmp.ne.s32.totalorder %s143, %s159
      %p161 = scmp.eq.s32.totalorder %s25, 0
      %p162 = por %p160, %p161
      %p163 = scmp.le.s32.totalorder 1, %s19
      %p164 = scmp.lt.s32.totalorder %s19, 3
      %p165 = pnand %p163, %p164
      %p166 = pneg %p165
      // Predicated region
      $region9: #{tpu_custom_call.1} parent=5 // pred_check
        _
      $region10: #{tpu_custom_call.1} parent=5 // pred_check_branch
        %168 = sbr.rel (%p165) target = $region12
      $region11: #{tpu_custom_call.1} parent=5 // pred_region
        %s169 = ssub.s32 %s19, 1
        // Predicated region
        $region13: #{tpu_custom_call.1} parent=11 // pred_check
          %p170 = pneg %p66
        $region14: #{tpu_custom_call.1} parent=11 // pred_check_branch
          %172 = sbr.rel (%p170) target = $region16
        $region15: #{tpu_custom_call.1} parent=11 // pred_region
          %s174 = ssub.s32 5120, 5120
          %175 = vsyncadd [#allocation6], %s174
          %s176 = sshll.u32 [#allocation5], 4
          %s177 = int_to_ptr.vmem [resolvable:$true] %s176
          %182 = dma.hbm_to_vmem [thread:$0]  %s1, 5120, %s177, [#allocation6], 320, 320, 20
        $region16: #{tpu_custom_call.1} parent=11 // pred_fallthru
          _
        // Predicated region
        $region17: #{tpu_custom_call.1} parent=11 // pred_check
          %p183 = pneg %p87
        $region18: #{tpu_custom_call.1} parent=11 // pred_check_branch
          %185 = sbr.rel (%p183) target = $region20
        $region19: #{tpu_custom_call.1} parent=11 // pred_region
          %s187 = ssub.s32 1024, 1024
          %188 = vsyncadd [#allocation6], %s187
          %s189 = sshll.u32 [#allocation7], 4
          %s190 = int_to_ptr.vmem [resolvable:$true] %s189
          %195 = dma.hbm_to_vmem [thread:$0]  %s2, 1024, %s190, [#allocation6], 64, 64, 4
        $region20: #{tpu_custom_call.1} parent=11 // pred_fallthru
          _
        // Predicated region
        $region21: #{tpu_custom_call.1} parent=11 // pred_check
          %p196 = pneg %p108
        $region22: #{tpu_custom_call.1} parent=11 // pred_check_branch
          %198 = sbr.rel (%p196) target = $region24
        $region23: #{tpu_custom_call.1} parent=11 // pred_region
          %s200 = ssub.s32 256, 256
          %201 = vsyncadd [#allocation9], %s200
          %s202 = sshll.u32 [#allocation8], 4
          %s203 = int_to_ptr.vmem [resolvable:$true] %s202
          %208 = dma.hbm_to_vmem [thread:$0]  %s3, 256, %s203, [#allocation9], 128, 128, 8
        $region24: #{tpu_custom_call.1} parent=11 // pred_fallthru
          _
        // Predicated region
        $region25: #{tpu_custom_call.1} parent=11 // pred_check
          %p209 = pneg %p129
        $region26: #{tpu_custom_call.1} parent=11 // pred_check_branch
          %211 = sbr.rel (%p209) target = $region28
        $region27: #{tpu_custom_call.1} parent=11 // pred_region
          %s213 = ssub.s32 256, 256
          %214 = vsyncadd [#allocation9], %s213
          %s215 = sshll.u32 [#allocation10], 4
          %s216 = int_to_ptr.vmem [resolvable:$true] %s215
          %221 = dma.hbm_to_vmem [thread:$0]  %s4, 256, %s216, [#allocation9], 128, 128, 8
        $region28: #{tpu_custom_call.1} parent=11 // pred_fallthru
          _
      $region12: #{tpu_custom_call.1} parent=5 // pred_fallthru
        _
      %p222 = scmp.lt.s32.totalorder %s19, 2
      // Predicated region
      $region29: #{tpu_custom_call.1} parent=5 // pred_check
        %p223 = pneg %p222
      $region30: #{tpu_custom_call.1} parent=5 // pred_check_branch
        %225 = sbr.rel (%p223) target = $region32
      $region31: #{tpu_custom_call.1} parent=5 // pred_region
        // Predicated region
        $region33: #{tpu_custom_call.1} parent=31 // pred_check
          %p226 = pneg %p39
        $region34: #{tpu_custom_call.1} parent=31 // pred_check_branch
          %228 = sbr.rel (%p226) target = $region36
        $region35: #{tpu_custom_call.1} parent=31 // pred_region
          %s229 = sand.u32 %s29, 1
          %s230 = scalar_lea.sflag [#allocation3], %s229
          %s231 = sand.u32 %s29, 1
          %s232 = smul.addr %s231, 8
          %s233 = scalar_lea.vmem [#allocation2], %s232
          %s235 = ssub.s32 128, 128
          %236 = vsyncadd %s230, %s235
          %s237 = smul.addr %s19, 2
          %s238 = smul.addr %s237, 64
          %s239 = scalar_lea.hbm %s0, %s238
          %s240 = sshll.u32 %s233, 4
          %s241 = int_to_ptr.vmem [resolvable:$true] %s240
          %246 = dma.hbm_to_vmem [thread:$0]  %s239, 128, %s241, %s230, 64, 64, 4
        $region36: #{tpu_custom_call.1} parent=31 // pred_fallthru
          _
      $region32: #{tpu_custom_call.1} parent=5 // pred_fallthru
        _
      %p247 = scmp.le.s32.totalorder 1, %s19
      %p248 = scmp.lt.s32.totalorder %s19, 3
      %p249 = pnand %p247, %p248
      %p250 = pneg %p249
      // Predicated region
      $region37: #{tpu_custom_call.1} parent=5 // pred_check
        _
      $region38: #{tpu_custom_call.1} parent=5 // pred_check_branch
        %252 = sbr.rel (%p249) target = $region40
      $region39: #{tpu_custom_call.1} parent=5 // pred_region
        %s253 = ssub.s32 %s19, 1
        %s254 = sand.u32 %s32, 1
        %s255 = scalar_lea.sflag [#allocation3], %s254
        %s256 = sand.u32 %s32, 1
        %s257 = smul.addr %s256, 8
        %s258 = scalar_lea.vmem [#allocation2], %s257
        // Predicated region
        $region41: #{tpu_custom_call.1} parent=39 // pred_check
          %p259 = pneg %p45
        $region42: #{tpu_custom_call.1} parent=39 // pred_check_branch
          %261 = sbr.rel (%p259) target = $region44
        $region43: #{tpu_custom_call.1} parent=39 // pred_region
          %262 = dma.done %s255, 128
        $region44: #{tpu_custom_call.1} parent=39 // pred_fallthru
          _
        // Predicated region
        $region45: #{tpu_custom_call.1} parent=39 // pred_check
          %p263 = pneg %p66
        $region46: #{tpu_custom_call.1} parent=39 // pred_check_branch
          %265 = sbr.rel (%p263) target = $region48
        $region47: #{tpu_custom_call.1} parent=39 // pred_region
          %266 = dma.done [#allocation6], 5120
        $region48: #{tpu_custom_call.1} parent=39 // pred_fallthru
          _
        // Predicated region
        $region49: #{tpu_custom_call.1} parent=39 // pred_check
          %p267 = pneg %p87
        $region50: #{tpu_custom_call.1} parent=39 // pred_check_branch
          %269 = sbr.rel (%p267) target = $region52
        $region51: #{tpu_custom_call.1} parent=39 // pred_region
          %270 = dma.done [#allocation6], 1024
        $region52: #{tpu_custom_call.1} parent=39 // pred_fallthru
          _
        // Predicated region
        $region53: #{tpu_custom_call.1} parent=39 // pred_check
          %p271 = pneg %p108
        $region54: #{tpu_custom_call.1} parent=39 // pred_check_branch
          %273 = sbr.rel (%p271) target = $region56
        $region55: #{tpu_custom_call.1} parent=39 // pred_region
          %274 = dma.done [#allocation9], 256
        $region56: #{tpu_custom_call.1} parent=39 // pred_fallthru
          _
        // Predicated region
        $region57: #{tpu_custom_call.1} parent=39 // pred_check
          %p275 = pneg %p129
        $region58: #{tpu_custom_call.1} parent=39 // pred_check_branch
          %277 = sbr.rel (%p275) target = $region60
        $region59: #{tpu_custom_call.1} parent=39 // pred_region
          %278 = dma.done [#allocation9], 256
        $region60: #{tpu_custom_call.1} parent=39 // pred_fallthru
          _
        %s279 = sand.u32 %s32, 1
        %s280 = scalar_lea.sflag [#allocation3], %s279
        %s281 = sand.u32 %s32, 1
        %s282 = smul.addr %s281, 8
        %s283 = scalar_lea.vmem [#allocation2], %s282
        %p284 = pneg %p45
        %p285 = pneg %p42
        %p286 = pneg %p66
        %p287 = pneg %p63
        %p288 = pneg %p87
        %p289 = pneg %p84
        %p290 = pneg %p108
        %p291 = pneg %p105
        %p292 = pneg %p129
        %p293 = pneg %p126
        %p294 = pneg %p155
        %p295 = pneg %p152
        %s296 = sand.u32 %s142, 1
        %s297 = scalar_lea.sflag [#allocation4], %s296
        %s298 = sand.u32 %s142, 1
        %s299 = smul.addr %s298, 16
        %s300 = scalar_lea.vmem [#allocation11], %s299
        %v302 = vld [vmem:[%s258] sm:$0xf]
        %v303 = vld [vmem:[%s258 + $0x4] sm:$0xf]
        %v304 = vld [vmem:[#allocation5] sm:$0xff]
        %v305 = vld [vmem:[#allocation5 + $0x8] sm:$0xff]
        %v306 = vld [vmem:[#allocation5 + $0x10] sm:$0xf]
        %v307 = vld [vmem:[#allocation5 + $0x14] sm:$0xff]
        %v308 = vld [vmem:[#allocation5 + $0x1c] sm:$0xff]
        %v309 = vld [vmem:[#allocation5 + $0x24] sm:$0xf]
        %v310 = vld [vmem:[#allocation5 + $0x28] sm:$0xff]
        %v311 = vld [vmem:[#allocation5 + $0x30] sm:$0xff]
        %v312 = vld [vmem:[#allocation5 + $0x38] sm:$0xf]
        %v313 = vld [vmem:[#allocation5 + $0x3c] sm:$0xff]
        %v314 = vld [vmem:[#allocation5 + $0x44] sm:$0xff]
        %v315 = vld [vmem:[#allocation5 + $0x4c] sm:$0xf]
        %v316 = vld [vmem:[#allocation5 + $0x50] sm:$0xff]
        %v317 = vld [vmem:[#allocation5 + $0x58] sm:$0xff]
        %v318 = vld [vmem:[#allocation5 + $0x60] sm:$0xf]
        %v319 = vld [vmem:[#allocation5 + $0x64] sm:$0xff]
        %v320 = vld [vmem:[#allocation5 + $0x6c] sm:$0xff]
        %v321 = vld [vmem:[#allocation5 + $0x74] sm:$0xf]
        %v322 = vld [vmem:[#allocation5 + $0x78] sm:$0xff]
        %v323 = vld [vmem:[#allocation5 + $0x80] sm:$0xff]
        %v324 = vld [vmem:[#allocation5 + $0x88] sm:$0xf]
        %v325 = vld [vmem:[#allocation5 + $0x8c] sm:$0xff]
        %v326 = vld [vmem:[#allocation5 + $0x94] sm:$0xff]
        %v327 = vld [vmem:[#allocation5 + $0x9c] sm:$0xf]
        %v328 = vld [vmem:[#allocation5 + $0xa0] sm:$0xff]
        %v329 = vld [vmem:[#allocation5 + $0xa8] sm:$0xff]
        %v330 = vld [vmem:[#allocation5 + $0xb0] sm:$0xf]
        %v331 = vld [vmem:[#allocation5 + $0xb4] sm:$0xff]
        %v332 = vld [vmem:[#allocation5 + $0xbc] sm:$0xff]
        %v333 = vld [vmem:[#allocation5 + $0xc4] sm:$0xf]
        %v334 = vld [vmem:[#allocation5 + $0xc8] sm:$0xff]
        %v335 = vld [vmem:[#allocation5 + $0xd0] sm:$0xff]
        %v336 = vld [vmem:[#allocation5 + $0xd8] sm:$0xf]
        %v337 = vld [vmem:[#allocation5 + $0xdc] sm:$0xff]
        %v338 = vld [vmem:[#allocation5 + $0xe4] sm:$0xff]
        %v339 = vld [vmem:[#allocation5 + $0xec] sm:$0xf]
        %v340 = vld [vmem:[#allocation5 + $0xf0] sm:$0xff]
        %v341 = vld [vmem:[#allocation5 + $0xf8] sm:$0xff]
        %v342 = vld [vmem:[#allocation5 + $0x100] sm:$0xf]
        %v343 = vld [vmem:[#allocation5 + $0x104] sm:$0xff]
        %v344 = vld [vmem:[#allocation5 + $0x10c] sm:$0xff]
        %v345 = vld [vmem:[#allocation5 + $0x114] sm:$0xf]
        %v346 = vld [vmem:[#allocation5 + $0x118] sm:$0xff]
        %v347 = vld [vmem:[#allocation5 + $0x120] sm:$0xff]
        %v348 = vld [vmem:[#allocation5 + $0x128] sm:$0xf]
        %v349 = vld [vmem:[#allocation5 + $0x12c] sm:$0xff]
        %v350 = vld [vmem:[#allocation5 + $0x134] sm:$0xff]
        %v351 = vld [vmem:[#allocation5 + $0x13c] sm:$0xf]
        %v354 = vunpack.c.l.b16 %v302
        %v355 = vunpack.c.l.b16 %v303
        %v356 = vpack.c.b16 %v355, %v354
        %v406 = vunpack.c.l.b16 %v304
        %v407 = vunpack.c.h.b16 %v304
        %v408 = vunpack.c.l.b16 %v305
        %v409 = vunpack.c.h.b16 %v305
        %v410 = vunpack.c.l.b16 %v306
        %v411 = vunpack.c.l.b16 %v307
        %v412 = vunpack.c.h.b16 %v307
        %v413 = vunpack.c.l.b16 %v308
        %v414 = vunpack.c.h.b16 %v308
        %v415 = vunpack.c.l.b16 %v309
        %v416 = vunpack.c.l.b16 %v310
        %v417 = vunpack.c.h.b16 %v310
        %v418 = vunpack.c.l.b16 %v311
        %v419 = vunpack.c.h.b16 %v311
        %v420 = vunpack.c.l.b16 %v312
        %v421 = vunpack.c.l.b16 %v313
        %v422 = vunpack.c.h.b16 %v313
        %v423 = vunpack.c.l.b16 %v314
        %v424 = vunpack.c.h.b16 %v314
        %v425 = vunpack.c.l.b16 %v315
        %v426 = vunpack.c.l.b16 %v316
        %v427 = vunpack.c.h.b16 %v316
        %v428 = vunpack.c.l.b16 %v317
        %v429 = vunpack.c.h.b16 %v317
        %v430 = vunpack.c.l.b16 %v318
        %v431 = vunpack.c.l.b16 %v319
        %v432 = vunpack.c.h.b16 %v319
        %v433 = vunpack.c.l.b16 %v320
        %v434 = vunpack.c.h.b16 %v320
        %v435 = vunpack.c.l.b16 %v321
        %v436 = vunpack.c.l.b16 %v322
        %v437 = vunpack.c.h.b16 %v322
        %v438 = vunpack.c.l.b16 %v323
        %v439 = vunpack.c.h.b16 %v323
        %v440 = vunpack.c.l.b16 %v324
        %v441 = vunpack.c.l.b16 %v325
        %v442 = vunpack.c.h.b16 %v325
        %v443 = vunpack.c.l.b16 %v326
        %v444 = vunpack.c.h.b16 %v326
        %v445 = vunpack.c.l.b16 %v327
        %v446 = vunpack.c.l.b16 %v328
        %v447 = vunpack.c.h.b16 %v328
        %v448 = vunpack.c.l.b16 %v329
        %v449 = vunpack.c.h.b16 %v329
        %v450 = vunpack.c.l.b16 %v330
        %v451 = vunpack.c.l.b16 %v331
        %v452 = vunpack.c.h.b16 %v331
        %v453 = vunpack.c.l.b16 %v332
        %v454 = vunpack.c.h.b16 %v332
        %v455 = vunpack.c.l.b16 %v333
        %v456 = vunpack.c.l.b16 %v334
        %v457 = vunpack.c.h.b16 %v334
        %v458 = vunpack.c.l.b16 %v335
        %v459 = vunpack.c.h.b16 %v335
        %v460 = vunpack.c.l.b16 %v336
        %v461 = vunpack.c.l.b16 %v337
        %v462 = vunpack.c.h.b16 %v337
        %v463 = vunpack.c.l.b16 %v338
        %v464 = vunpack.c.h.b16 %v338
        %v465 = vunpack.c.l.b16 %v339
        %v466 = vunpack.c.l.b16 %v340
        %v467 = vunpack.c.h.b16 %v340
        %v468 = vunpack.c.l.b16 %v341
        %v469 = vunpack.c.h.b16 %v341
        %v470 = vunpack.c.l.b16 %v342
        %v471 = vunpack.c.l.b16 %v343
        %v472 = vunpack.c.h.b16 %v343
        %v473 = vunpack.c.l.b16 %v344
        %v474 = vunpack.c.h.b16 %v344
        %v475 = vunpack.c.l.b16 %v345
        %v476 = vunpack.c.l.b16 %v346
        %v477 = vunpack.c.h.b16 %v346
        %v478 = vunpack.c.l.b16 %v347
        %v479 = vunpack.c.h.b16 %v347
        %v480 = vunpack.c.l.b16 %v348
        %v481 = vunpack.c.l.b16 %v349
        %v482 = vunpack.c.h.b16 %v349
        %v483 = vunpack.c.l.b16 %v350
        %v484 = vunpack.c.h.b16 %v350
        %v485 = vunpack.c.l.b16 %v351
        %v486 = vpack.c.b16 %v411, %v406
        %v487 = vpack.c.b16 %v412, %v407
        %v488 = vpack.c.b16 %v413, %v408
        %v489 = vpack.c.b16 %v414, %v409
        %v490 = vpack.c.b16 %v415, %v410
        %v491 = vpack.c.b16 %v421, %v416
        %v492 = vpack.c.b16 %v422, %v417
        %v493 = vpack.c.b16 %v423, %v418
        %v494 = vpack.c.b16 %v424, %v419
        %v495 = vpack.c.b16 %v425, %v420
        %v496 = vpack.c.b16 %v431, %v426
        %v497 = vpack.c.b16 %v432, %v427
        %v498 = vpack.c.b16 %v433, %v428
        %v499 = vpack.c.b16 %v434, %v429
        %v500 = vpack.c.b16 %v435, %v430
        %v501 = vpack.c.b16 %v441, %v436
        %v502 = vpack.c.b16 %v442, %v437
        %v503 = vpack.c.b16 %v443, %v438
        %v504 = vpack.c.b16 %v444, %v439
        %v505 = vpack.c.b16 %v445, %v440
        %v506 = vpack.c.b16 %v451, %v446
        %v507 = vpack.c.b16 %v452, %v447
        %v508 = vpack.c.b16 %v453, %v448
        %v509 = vpack.c.b16 %v454, %v449
        %v510 = vpack.c.b16 %v455, %v450
        %v511 = vpack.c.b16 %v461, %v456
        %v512 = vpack.c.b16 %v462, %v457
        %v513 = vpack.c.b16 %v463, %v458
        %v514 = vpack.c.b16 %v464, %v459
        %v515 = vpack.c.b16 %v465, %v460
        %v516 = vpack.c.b16 %v471, %v466
        %v517 = vpack.c.b16 %v472, %v467
        %v518 = vpack.c.b16 %v473, %v468
        %v519 = vpack.c.b16 %v474, %v469
        %v520 = vpack.c.b16 %v475, %v470
        %v521 = vpack.c.b16 %v481, %v476
        %v522 = vpack.c.b16 %v482, %v477
        %v523 = vpack.c.b16 %v483, %v478
        %v524 = vpack.c.b16 %v484, %v479
        %v525 = vpack.c.b16 %v485, %v480
        %566 = vmatprep.subr.bf16.mxu0 %v487
        %567 = vmatpush1.bf16.msra.mxu0 %v486
        %568 = vmatprep.subr.bf16.mxu0 %v492
        %569 = vmatpush1.bf16.msra.mxu0 %v491
        %570 = vmatprep.subr.bf16.mxu0 %v497
        %571 = vmatpush1.bf16.msra.mxu0 %v496
        %572 = vmatprep.subr.bf16.mxu0 %v502
        %573 = vmatpush1.bf16.msra.mxu0 %v501
        %574 = vmatprep.subr.bf16.mxu0 %v507
        %575 = vmatpush1.bf16.msra.mxu0 %v506
        %576 = vmatprep.subr.bf16.mxu0 %v512
        %577 = vmatpush1.bf16.msra.mxu0 %v511
        %578 = vmatprep.subr.bf16.mxu0 %v517
        %579 = vmatpush1.bf16.msra.mxu0 %v516
        %580 = vmatprep.subr.bf16.mxu0 %v522
        %581 = vmatpush1.bf16.msra.mxu0 %v521
        %582 = vmatprep.subr.bf16.mxu0 0
        %583 = vmatpush1.bf16.msra.mxu0 0
        %584 = vmatprep.subr.bf16.mxu0 0
        %585 = vmatpush1.bf16.msra.mxu0 0
        %586 = vmatprep.subr.bf16.mxu0 0
        %587 = vmatpush1.bf16.msra.mxu0 0
        %588 = vmatprep.subr.bf16.mxu0 0
        %589 = vmatpush1.bf16.msra.mxu0 0
        %590 = vmatprep.subr.bf16.mxu0 0
        %591 = vmatpush1.bf16.msra.mxu0 0
        %592 = vmatprep.subr.bf16.mxu0 0
        %593 = vmatpush1.bf16.msra.mxu0 0
        %594 = vmatprep.subr.bf16.mxu0 0
        %595 = vmatpush1.bf16.msra.mxu0 0
        %596 = vmatprep.subr.bf16.mxu0 0
        %597 = vmatpush1.bf16.msra.mxu0 0
        %598 = vmatprep.mubr.bf16.mxu0 0
        %599 = vmatmul.mubr.bf16.gmra.mrb[0].mxu0 %v356
        %v600 = vpop.f32.mrb[0].mxu0
        %v601 = vadd.f32 0.0, %v600
        %v602 = vpop.f32.mrb[0].mxu0
        %v603 = vadd.f32 0.0, %v602
        %v604 = vpop.f32.mrb[0].mxu0
        %v605 = vadd.f32 0.0, %v604
        %v606 = vpop.f32.mrb[0].mxu0
        %v607 = vadd.f32 0.0, %v606
        %608 = vdwg.mxu0
        %609 = vmatprep.subr.bf16.mxu0 %v489
        %610 = vmatpush1.bf16.msra.mxu0 %v488
        %611 = vmatprep.subr.bf16.mxu0 %v494
        %612 = vmatpush1.bf16.msra.mxu0 %v493
        %613 = vmatprep.subr.bf16.mxu0 %v499
        %614 = vmatpush1.bf16.msra.mxu0 %v498
        %615 = vmatprep.subr.bf16.mxu0 %v504
        %616 = vmatpush1.bf16.msra.mxu0 %v503
        %617 = vmatprep.subr.bf16.mxu0 %v509
        %618 = vmatpush1.bf16.msra.mxu0 %v508
        %619 = vmatprep.subr.bf16.mxu0 %v514
        %620 = vmatpush1.bf16.msra.mxu0 %v513
        %621 = vmatprep.subr.bf16.mxu0 %v519
        %622 = vmatpush1.bf16.msra.mxu0 %v518
        %623 = vmatprep.subr.bf16.mxu0 %v524
        %624 = vmatpush1.bf16.msra.mxu0 %v523
        %625 = vmatprep.subr.bf16.mxu0 0
        %626 = vmatpush1.bf16.msra.mxu0 0
        %627 = vmatprep.subr.bf16.mxu0 0
        %628 = vmatpush1.bf16.msra.mxu0 0
        %629 = vmatprep.subr.bf16.mxu0 0
        %630 = vmatpush1.bf16.msra.mxu0 0
        %631 = vmatprep.subr.bf16.mxu0 0
        %632 = vmatpush1.bf16.msra.mxu0 0
        %633 = vmatprep.subr.bf16.mxu0 0
        %634 = vmatpush1.bf16.msra.mxu0 0
        %635 = vmatprep.subr.bf16.mxu0 0
        %636 = vmatpush1.bf16.msra.mxu0 0
        %637 = vmatprep.subr.bf16.mxu0 0
        %638 = vmatpush1.bf16.msra.mxu0 0
        %639 = vmatprep.subr.bf16.mxu0 0
        %640 = vmatpush1.bf16.msra.mxu0 0
        %641 = vmatprep.mubr.bf16.mxu0 0
        %642 = vmatmul.mubr.bf16.gmra.mrb[0].mxu0 %v356
        %v643 = vpop.f32.mrb[0].mxu0
        %v644 = vadd.f32 0.0, %v643
        %v645 = vpop.f32.mrb[0].mxu0
        %v646 = vadd.f32 0.0, %v645
        %v647 = vpop.f32.mrb[0].mxu0
        %v648 = vadd.f32 0.0, %v647
        %v649 = vpop.f32.mrb[0].mxu0
        %v650 = vadd.f32 0.0, %v649
        %651 = vdwg.mxu0
        %652 = vmatprep.subr.bf16.mxu0 0
        %653 = vmatpush1.bf16.msra.mxu0 %v490
        %654 = vmatprep.subr.bf16.mxu0 0
        %655 = vmatpush1.bf16.msra.mxu0 %v495
        %656 = vmatprep.subr.bf16.mxu0 0
        %657 = vmatpush1.bf16.msra.mxu0 %v500
        %658 = vmatprep.subr.bf16.mxu0 0
        %659 = vmatpush1.bf16.msra.mxu0 %v505
        %660 = vmatprep.subr.bf16.mxu0 0
        %661 = vmatpush1.bf16.msra.mxu0 %v510
        %662 = vmatprep.subr.bf16.mxu0 0
        %663 = vmatpush1.bf16.msra.mxu0 %v515
        %664 = vmatprep.subr.bf16.mxu0 0
        %665 = vmatpush1.bf16.msra.mxu0 %v520
        %666 = vmatprep.subr.bf16.mxu0 0
        %667 = vmatpush1.bf16.msra.mxu0 %v525
        %668 = vmatprep.subr.bf16.mxu0 0
        %669 = vmatpush1.bf16.msra.mxu0 0
        %670 = vmatprep.subr.bf16.mxu0 0
        %671 = vmatpush1.bf16.msra.mxu0 0
        %672 = vmatprep.subr.bf16.mxu0 0
        %673 = vmatpush1.bf16.msra.mxu0 0
        %674 = vmatprep.subr.bf16.mxu0 0
        %675 = vmatpush1.bf16.msra.mxu0 0
        %676 = vmatprep.subr.bf16.mxu0 0
        %677 = vmatpush1.bf16.msra.mxu0 0
        %678 = vmatprep.subr.bf16.mxu0 0
        %679 = vmatpush1.bf16.msra.mxu0 0
        %680 = vmatprep.subr.bf16.mxu0 0
        %681 = vmatpush1.bf16.msra.mxu0 0
        %682 = vmatprep.subr.bf16.mxu0 0
        %683 = vmatpush1.bf16.msra.mxu0 0
        %684 = vmatprep.mubr.bf16.mxu0 0
        %685 = vmatmul.mubr.bf16.gmra.mrb[0].mxu0 %v356
        %v686 = vpop.f32.mrb[0].mxu0
        %v687 = vadd.f32 0.0, %v686
        %v688 = vpop.f32.mrb[0].mxu0
        %v689 = vpop.f32.mrb[0].mxu0
        %v690 = vadd.f32 0.0, %v689
        %v691 = vpop.f32.mrb[0].mxu0
        %692 = vdwg.mxu0
        %v693 = vld [vmem:[#allocation8] sm:$0xff]
        %v694 = vld [vmem:[#allocation8 + $0x8] sm:$0xff]
        %v695 = vld [vmem:[#allocation10] sm:$0xff]
        %v696 = vld [vmem:[#allocation10 + $0x8] sm:$0xff]
        %v697 = vmul.f32 %v601, %v693
        %v698 = vmul.f32 %v605, %v694
        %v699 = vmul.f32 %v603, %v695
        %v700 = vmul.f32 %v607, %v696
        %v701 = vadd.f32 %v697, %v699
        %v702 = vadd.f32 %v698, %v700
        %v703 = vmul.f32 %v644, %v693
        %v704 = vmul.f32 %v648, %v694
        %v705 = vmul.f32 %v646, %v695
        %v706 = vmul.f32 %v650, %v696
        %v707 = vadd.f32 %v703, %v705
        %v708 = vadd.f32 %v704, %v706
        %711 = vrot.lane.b32.xlu0 %v701, 96
        %v712 = vpop.permute.xlu0 %711
        %713 = vrot.lane.b32.xlu0 %v702, 96
        %v714 = vpop.permute.xlu0 %713
        %717 = vrot.lane.b32.xlu0 %v701, 64
        %v718 = vpop.permute.xlu0 %717
        %719 = vrot.lane.b32.xlu0 %v702, 64
        %v720 = vpop.permute.xlu0 %719
        %723 = vrot.lane.b32.xlu0 %v701, 32
        %v724 = vpop.permute.xlu0 %723
        %725 = vrot.lane.b32.xlu0 %v702, 32
        %v726 = vpop.permute.xlu0 %725
        %v729 = vcombine.low %v701, %v718
        %v730 = vcombine.high %v701, %v718
        %v732 = vunpack.c.l.s4 1983009808
        %v733 = vunpack.c.0.s8 %v732
        %v734 = vlaneseq
        %v735 = vshrl.u32 %v734, 7
        %v736 = vsub.s32 %v733, %v735
        %v737 = vrot.slane %v729, %v736
        %v739 = vunpack.c.l.s4 1983009808
        %v740 = vunpack.c.0.s8 %v739
        %v741 = vlaneseq
        %v742 = vshrl.u32 %v741, 7
        %v743 = vsub.s32 %v740, %v742
        %v744 = vrot.slane %v730, %v743
        %v745 = vcombine.low %v712, %v724
        %v746 = vcombine.high %v712, %v724
        %v748 = vunpack.c.l.s4 1983009808
        %v749 = vunpack.c.0.s8 %v748
        %v750 = vlaneseq
        %v751 = vshrl.u32 %v750, 7
        %v752 = vsub.s32 %v749, %v751
        %v753 = vrot.slane %v745, %v752
        %v755 = vunpack.c.l.s4 1983009808
        %v756 = vunpack.c.0.s8 %v755
        %v757 = vlaneseq
        %v758 = vshrl.u32 %v757, 7
        %v759 = vsub.s32 %v756, %v758
        %v760 = vrot.slane %v746, %v759
        %v761 = vcombine.low %v737, %v753
        %v762 = vcombine.high %v737, %v753
        %v764 = vunpack.c.l.s4 1934713408
        %v765 = vunpack.c.0.s8 %v764
        %v766 = vlaneseq
        %v767 = vshrl.u32 %v766, 7
        %v768 = vsub.s32 %v765, %v767
        %v769 = vrot.slane %v761, %v768
        %v771 = vunpack.c.l.s4 1934713408
        %v772 = vunpack.c.0.s8 %v771
        %v773 = vlaneseq
        %v774 = vshrl.u32 %v773, 7
        %v775 = vsub.s32 %v772, %v774
        %v776 = vrot.slane %v762, %v775
        %v777 = vcombine.low %v744, %v760
        %v778 = vcombine.high %v744, %v760
        %v780 = vunpack.c.l.s4 1934713408
        %v781 = vunpack.c.0.s8 %v780
        %v782 = vlaneseq
        %v783 = vshrl.u32 %v782, 7
        %v784 = vsub.s32 %v781, %v783
        %v785 = vrot.slane %v777, %v784
        %v787 = vunpack.c.l.s4 1934713408
        %v788 = vunpack.c.0.s8 %v787
        %v789 = vlaneseq
        %v790 = vshrl.u32 %v789, 7
        %v791 = vsub.s32 %v788, %v790
        %v792 = vrot.slane %v778, %v791
        %v793 = vcombine.high %v769, 0.0
        %v794 = vcombine.high %v776, 0.0
        %v795 = vcombine.high %v785, 0.0
        %v796 = vcombine.high %v792, 0.0
        %v797 = vcombine.low %v702, %v720
        %v798 = vcombine.high %v702, %v720
        %v800 = vunpack.c.l.s4 1983009808
        %v801 = vunpack.c.0.s8 %v800
        %v802 = vlaneseq
        %v803 = vshrl.u32 %v802, 7
        %v804 = vsub.s32 %v801, %v803
        %v805 = vrot.slane %v797, %v804
        %v807 = vunpack.c.l.s4 1983009808
        %v808 = vunpack.c.0.s8 %v807
        %v809 = vlaneseq
        %v810 = vshrl.u32 %v809, 7
        %v811 = vsub.s32 %v808, %v810
        %v812 = vrot.slane %v798, %v811
        %v813 = vcombine.low %v714, %v726
        %v814 = vcombine.high %v714, %v726
        %v816 = vunpack.c.l.s4 1983009808
        %v817 = vunpack.c.0.s8 %v816
        %v818 = vlaneseq
        %v819 = vshrl.u32 %v818, 7
        %v820 = vsub.s32 %v817, %v819
        %v821 = vrot.slane %v813, %v820
        %v823 = vunpack.c.l.s4 1983009808
        %v824 = vunpack.c.0.s8 %v823
        %v825 = vlaneseq
        %v826 = vshrl.u32 %v825, 7
        %v827 = vsub.s32 %v824, %v826
        %v828 = vrot.slane %v814, %v827
        %v829 = vcombine.low %v805, %v821
        %v830 = vcombine.high %v805, %v821
        %v832 = vunpack.c.l.s4 1934713408
        %v833 = vunpack.c.0.s8 %v832
        %v834 = vlaneseq
        %v835 = vshrl.u32 %v834, 7
        %v836 = vsub.s32 %v833, %v835
        %v837 = vrot.slane %v829, %v836
        %v839 = vunpack.c.l.s4 1934713408
        %v840 = vunpack.c.0.s8 %v839
        %v841 = vlaneseq
        %v842 = vshrl.u32 %v841, 7
        %v843 = vsub.s32 %v840, %v842
        %v844 = vrot.slane %v830, %v843
        %v845 = vcombine.low %v812, %v828
        %v846 = vcombine.high %v812, %v828
        %v848 = vunpack.c.l.s4 1934713408
        %v849 = vunpack.c.0.s8 %v848
        %v850 = vlaneseq
        %v851 = vshrl.u32 %v850, 7
        %v852 = vsub.s32 %v849, %v851
        %v853 = vrot.slane %v845, %v852
        %v855 = vunpack.c.l.s4 1934713408
        %v856 = vunpack.c.0.s8 %v855
        %v857 = vlaneseq
        %v858 = vshrl.u32 %v857, 7
        %v859 = vsub.s32 %v856, %v858
        %v860 = vrot.slane %v846, %v859
        %v861 = vcombine.high %v837, 0.0
        %v862 = vcombine.high %v844, 0.0
        %v863 = vcombine.high %v853, 0.0
        %v864 = vcombine.high %v860, 0.0
        %v865 = vcombine.low %v769, %v776
        %v867 = vunpack.c.l.s4 1983009808
        %v868 = vunpack.c.0.s8 %v867
        %v869 = vlaneseq
        %v870 = vshrl.u32 %v869, 7
        %v871 = vsub.s32 %v868, %v870
        %v872 = vrot.slane %v865, %v871
        %v873 = vcombine.low %v793, %v794
        %v875 = vunpack.c.l.s4 1983009808
        %v876 = vunpack.c.0.s8 %v875
        %v877 = vlaneseq
        %v878 = vshrl.u32 %v877, 7
        %v879 = vsub.s32 %v876, %v878
        %v880 = vrot.slane %v873, %v879
        %v881 = vcombine.low %v785, %v792
        %v883 = vunpack.c.l.s4 1983009808
        %v884 = vunpack.c.0.s8 %v883
        %v885 = vlaneseq
        %v886 = vshrl.u32 %v885, 7
        %v887 = vsub.s32 %v884, %v886
        %v888 = vrot.slane %v881, %v887
        %v889 = vcombine.low %v795, %v796
        %v891 = vunpack.c.l.s4 1983009808
        %v892 = vunpack.c.0.s8 %v891
        %v893 = vlaneseq
        %v894 = vshrl.u32 %v893, 7
        %v895 = vsub.s32 %v892, %v894
        %v896 = vrot.slane %v889, %v895
        %v897 = vcombine.low %v872, %v880
        %v898 = vcombine.high %v872, %v880
        %v900 = vunpack.c.l.s4 1934713408
        %v901 = vunpack.c.0.s8 %v900
        %v902 = vlaneseq
        %v903 = vshrl.u32 %v902, 7
        %v904 = vsub.s32 %v901, %v903
        %v905 = vrot.slane %v897, %v904
        %v907 = vunpack.c.l.s4 1934713408
        %v908 = vunpack.c.0.s8 %v907
        %v909 = vlaneseq
        %v910 = vshrl.u32 %v909, 7
        %v911 = vsub.s32 %v908, %v910
        %v912 = vrot.slane %v898, %v911
        %v913 = vcombine.low %v888, %v896
        %v914 = vcombine.high %v888, %v896
        %v916 = vunpack.c.l.s4 1934713408
        %v917 = vunpack.c.0.s8 %v916
        %v918 = vlaneseq
        %v919 = vshrl.u32 %v918, 7
        %v920 = vsub.s32 %v917, %v919
        %v921 = vrot.slane %v913, %v920
        %v923 = vunpack.c.l.s4 1934713408
        %v924 = vunpack.c.0.s8 %v923
        %v925 = vlaneseq
        %v926 = vshrl.u32 %v925, 7
        %v927 = vsub.s32 %v924, %v926
        %v928 = vrot.slane %v914, %v927
        %v929 = vcombine.low %v905, %v921
        %v930 = vcombine.high %v905, %v921
        %v931 = vcombine.low %v912, %v928
        %v932 = vcombine.high %v912, %v928
        %v933 = vcombine.low %v837, %v844
        %v935 = vunpack.c.l.s4 1983009808
        %v936 = vunpack.c.0.s8 %v935
        %v937 = vlaneseq
        %v938 = vshrl.u32 %v937, 7
        %v939 = vsub.s32 %v936, %v938
        %v940 = vrot.slane %v933, %v939
        %v941 = vcombine.low %v861, %v862
        %v943 = vunpack.c.l.s4 1983009808
        %v944 = vunpack.c.0.s8 %v943
        %v945 = vlaneseq
        %v946 = vshrl.u32 %v945, 7
        %v947 = vsub.s32 %v944, %v946
        %v948 = vrot.slane %v941, %v947
        %v949 = vcombine.low %v853, %v860
        %v951 = vunpack.c.l.s4 1983009808
        %v952 = vunpack.c.0.s8 %v951
        %v953 = vlaneseq
        %v954 = vshrl.u32 %v953, 7
        %v955 = vsub.s32 %v952, %v954
        %v956 = vrot.slane %v949, %v955
        %v957 = vcombine.low %v863, %v864
        %v959 = vunpack.c.l.s4 1983009808
        %v960 = vunpack.c.0.s8 %v959
        %v961 = vlaneseq
        %v962 = vshrl.u32 %v961, 7
        %v963 = vsub.s32 %v960, %v962
        %v964 = vrot.slane %v957, %v963
        %v965 = vcombine.low %v940, %v948
        %v966 = vcombine.high %v940, %v948
        %v968 = vunpack.c.l.s4 1934713408
        %v969 = vunpack.c.0.s8 %v968
        %v970 = vlaneseq
        %v971 = vshrl.u32 %v970, 7
        %v972 = vsub.s32 %v969, %v971
        %v973 = vrot.slane %v965, %v972
        %v975 = vunpack.c.l.s4 1934713408
        %v976 = vunpack.c.0.s8 %v975
        %v977 = vlaneseq
        %v978 = vshrl.u32 %v977, 7
        %v979 = vsub.s32 %v976, %v978
        %v980 = vrot.slane %v966, %v979
        %v981 = vcombine.low %v956, %v964
        %v982 = vcombine.high %v956, %v964
        %v984 = vunpack.c.l.s4 1934713408
        %v985 = vunpack.c.0.s8 %v984
        %v986 = vlaneseq
        %v987 = vshrl.u32 %v986, 7
        %v988 = vsub.s32 %v985, %v987
        %v989 = vrot.slane %v981, %v988
        %v991 = vunpack.c.l.s4 1934713408
        %v992 = vunpack.c.0.s8 %v991
        %v993 = vlaneseq
        %v994 = vshrl.u32 %v993, 7
        %v995 = vsub.s32 %v992, %v994
        %v996 = vrot.slane %v982, %v995
        %v997 = vcombine.low %v973, %v989
        %v998 = vcombine.high %v973, %v989
        %v999 = vcombine.low %v980, %v996
        %v1000 = vcombine.high %v980, %v996
        %v1001 = vpack.c.bf16 %v997, %v929
        %v1002 = vpack.c.bf16 %v998, %v930
        %v1003 = vpack.c.bf16 %v999, %v931
        %v1004 = vpack.c.bf16 %v1000, %v932
        %1007 = vrot.lane.b32.xlu0 %v707, 96
        %v1008 = vpop.permute.xlu0 %1007
        %1009 = vrot.lane.b32.xlu0 %v708, 96
        %v1010 = vpop.permute.xlu0 %1009
        %1013 = vrot.lane.b32.xlu0 %v707, 64
        %v1014 = vpop.permute.xlu0 %1013
        %1015 = vrot.lane.b32.xlu0 %v708, 64
        %v1016 = vpop.permute.xlu0 %1015
        %1019 = vrot.lane.b32.xlu0 %v707, 32
        %v1020 = vpop.permute.xlu0 %1019
        %1021 = vrot.lane.b32.xlu0 %v708, 32
        %v1022 = vpop.permute.xlu0 %1021
        %v1025 = vcombine.low %v707, %v1014
        %v1026 = vcombine.high %v707, %v1014
        %v1028 = vunpack.c.l.s4 1983009808
        %v1029 = vunpack.c.0.s8 %v1028
        %v1030 = vlaneseq
        %v1031 = vshrl.u32 %v1030, 7
        %v1032 = vsub.s32 %v1029, %v1031
        %v1033 = vrot.slane %v1025, %v1032
        %v1035 = vunpack.c.l.s4 1983009808
        %v1036 = vunpack.c.0.s8 %v1035
        %v1037 = vlaneseq
        %v1038 = vshrl.u32 %v1037, 7
        %v1039 = vsub.s32 %v1036, %v1038
        %v1040 = vrot.slane %v1026, %v1039
        %v1041 = vcombine.low %v1008, %v1020
        %v1042 = vcombine.high %v1008, %v1020
        %v1044 = vunpack.c.l.s4 1983009808
        %v1045 = vunpack.c.0.s8 %v1044
        %v1046 = vlaneseq
        %v1047 = vshrl.u32 %v1046, 7
        %v1048 = vsub.s32 %v1045, %v1047
        %v1049 = vrot.slane %v1041, %v1048
        %v1051 = vunpack.c.l.s4 1983009808
        %v1052 = vunpack.c.0.s8 %v1051
        %v1053 = vlaneseq
        %v1054 = vshrl.u32 %v1053, 7
        %v1055 = vsub.s32 %v1052, %v1054
        %v1056 = vrot.slane %v1042, %v1055
        %v1057 = vcombine.low %v1033, %v1049
        %v1058 = vcombine.high %v1033, %v1049
        %v1060 = vunpack.c.l.s4 1934713408
        %v1061 = vunpack.c.0.s8 %v1060
        %v1062 = vlaneseq
        %v1063 = vshrl.u32 %v1062, 7
        %v1064 = vsub.s32 %v1061, %v1063
        %v1065 = vrot.slane %v1057, %v1064
        %v1067 = vunpack.c.l.s4 1934713408
        %v1068 = vunpack.c.0.s8 %v1067
        %v1069 = vlaneseq
        %v1070 = vshrl.u32 %v1069, 7
        %v1071 = vsub.s32 %v1068, %v1070
        %v1072 = vrot.slane %v1058, %v1071
        %v1073 = vcombine.low %v1040, %v1056
        %v1074 = vcombine.high %v1040, %v1056
        %v1076 = vunpack.c.l.s4 1934713408
        %v1077 = vunpack.c.0.s8 %v1076
        %v1078 = vlaneseq
        %v1079 = vshrl.u32 %v1078, 7
        %v1080 = vsub.s32 %v1077, %v1079
        %v1081 = vrot.slane %v1073, %v1080
        %v1083 = vunpack.c.l.s4 1934713408
        %v1084 = vunpack.c.0.s8 %v1083
        %v1085 = vlaneseq
        %v1086 = vshrl.u32 %v1085, 7
        %v1087 = vsub.s32 %v1084, %v1086
        %v1088 = vrot.slane %v1074, %v1087
        %v1089 = vcombine.high %v1065, 0.0
        %v1090 = vcombine.high %v1072, 0.0
        %v1091 = vcombine.high %v1081, 0.0
        %v1092 = vcombine.high %v1088, 0.0
        %v1093 = vcombine.low %v708, %v1016
        %v1094 = vcombine.high %v708, %v1016
        %v1096 = vunpack.c.l.s4 1983009808
        %v1097 = vunpack.c.0.s8 %v1096
        %v1098 = vlaneseq
        %v1099 = vshrl.u32 %v1098, 7
        %v1100 = vsub.s32 %v1097, %v1099
        %v1101 = vrot.slane %v1093, %v1100
        %v1103 = vunpack.c.l.s4 1983009808
        %v1104 = vunpack.c.0.s8 %v1103
        %v1105 = vlaneseq
        %v1106 = vshrl.u32 %v1105, 7
        %v1107 = vsub.s32 %v1104, %v1106
        %v1108 = vrot.slane %v1094, %v1107
        %v1109 = vcombine.low %v1010, %v1022
        %v1110 = vcombine.high %v1010, %v1022
        %v1112 = vunpack.c.l.s4 1983009808
        %v1113 = vunpack.c.0.s8 %v1112
        %v1114 = vlaneseq
        %v1115 = vshrl.u32 %v1114, 7
        %v1116 = vsub.s32 %v1113, %v1115
        %v1117 = vrot.slane %v1109, %v1116
        %v1119 = vunpack.c.l.s4 1983009808
        %v1120 = vunpack.c.0.s8 %v1119
        %v1121 = vlaneseq
        %v1122 = vshrl.u32 %v1121, 7
        %v1123 = vsub.s32 %v1120, %v1122
        %v1124 = vrot.slane %v1110, %v1123
        %v1125 = vcombine.low %v1101, %v1117
        %v1126 = vcombine.high %v1101, %v1117
        %v1128 = vunpack.c.l.s4 1934713408
        %v1129 = vunpack.c.0.s8 %v1128
        %v1130 = vlaneseq
        %v1131 = vshrl.u32 %v1130, 7
        %v1132 = vsub.s32 %v1129, %v1131
        %v1133 = vrot.slane %v1125, %v1132
        %v1135 = vunpack.c.l.s4 1934713408
        %v1136 = vunpack.c.0.s8 %v1135
        %v1137 = vlaneseq
        %v1138 = vshrl.u32 %v1137, 7
        %v1139 = vsub.s32 %v1136, %v1138
        %v1140 = vrot.slane %v1126, %v1139
        %v1141 = vcombine.low %v1108, %v1124
        %v1142 = vcombine.high %v1108, %v1124
        %v1144 = vunpack.c.l.s4 1934713408
        %v1145 = vunpack.c.0.s8 %v1144
        %v1146 = vlaneseq
        %v1147 = vshrl.u32 %v1146, 7
        %v1148 = vsub.s32 %v1145, %v1147
        %v1149 = vrot.slane %v1141, %v1148
        %v1151 = vunpack.c.l.s4 1934713408
        %v1152 = vunpack.c.0.s8 %v1151
        %v1153 = vlaneseq
        %v1154 = vshrl.u32 %v1153, 7
        %v1155 = vsub.s32 %v1152, %v1154
        %v1156 = vrot.slane %v1142, %v1155
        %v1157 = vcombine.high %v1133, 0.0
        %v1158 = vcombine.high %v1140, 0.0
        %v1159 = vcombine.high %v1149, 0.0
        %v1160 = vcombine.high %v1156, 0.0
        %v1161 = vcombine.low %v1065, %v1072
        %v1163 = vunpack.c.l.s4 1983009808
        %v1164 = vunpack.c.0.s8 %v1163
        %v1165 = vlaneseq
        %v1166 = vshrl.u32 %v1165, 7
        %v1167 = vsub.s32 %v1164, %v1166
        %v1168 = vrot.slane %v1161, %v1167
        %v1169 = vcombine.low %v1089, %v1090
        %v1171 = vunpack.c.l.s4 1983009808
        %v1172 = vunpack.c.0.s8 %v1171
        %v1173 = vlaneseq
        %v1174 = vshrl.u32 %v1173, 7
        %v1175 = vsub.s32 %v1172, %v1174
        %v1176 = vrot.slane %v1169, %v1175
        %v1177 = vcombine.low %v1081, %v1088
        %v1179 = vunpack.c.l.s4 1983009808
        %v1180 = vunpack.c.0.s8 %v1179
        %v1181 = vlaneseq
        %v1182 = vshrl.u32 %v1181, 7
        %v1183 = vsub.s32 %v1180, %v1182
        %v1184 = vrot.slane %v1177, %v1183
        %v1185 = vcombine.low %v1091, %v1092
        %v1187 = vunpack.c.l.s4 1983009808
        %v1188 = vunpack.c.0.s8 %v1187
        %v1189 = vlaneseq
        %v1190 = vshrl.u32 %v1189, 7
        %v1191 = vsub.s32 %v1188, %v1190
        %v1192 = vrot.slane %v1185, %v1191
        %v1193 = vcombine.low %v1168, %v1176
        %v1194 = vcombine.high %v1168, %v1176
        %v1196 = vunpack.c.l.s4 1934713408
        %v1197 = vunpack.c.0.s8 %v1196
        %v1198 = vlaneseq
        %v1199 = vshrl.u32 %v1198, 7
        %v1200 = vsub.s32 %v1197, %v1199
        %v1201 = vrot.slane %v1193, %v1200
        %v1203 = vunpack.c.l.s4 1934713408
        %v1204 = vunpack.c.0.s8 %v1203
        %v1205 = vlaneseq
        %v1206 = vshrl.u32 %v1205, 7
        %v1207 = vsub.s32 %v1204, %v1206
        %v1208 = vrot.slane %v1194, %v1207
        %v1209 = vcombine.low %v1184, %v1192
        %v1210 = vcombine.high %v1184, %v1192
        %v1212 = vunpack.c.l.s4 1934713408
        %v1213 = vunpack.c.0.s8 %v1212
        %v1214 = vlaneseq
        %v1215 = vshrl.u32 %v1214, 7
        %v1216 = vsub.s32 %v1213, %v1215
        %v1217 = vrot.slane %v1209, %v1216
        %v1219 = vunpack.c.l.s4 1934713408
        %v1220 = vunpack.c.0.s8 %v1219
        %v1221 = vlaneseq
        %v1222 = vshrl.u32 %v1221, 7
        %v1223 = vsub.s32 %v1220, %v1222
        %v1224 = vrot.slane %v1210, %v1223
        %v1225 = vcombine.low %v1201, %v1217
        %v1226 = vcombine.high %v1201, %v1217
        %v1227 = vcombine.low %v1208, %v1224
        %v1228 = vcombine.high %v1208, %v1224
        %v1229 = vcombine.low %v1133, %v1140
        %v1231 = vunpack.c.l.s4 1983009808
        %v1232 = vunpack.c.0.s8 %v1231
        %v1233 = vlaneseq
        %v1234 = vshrl.u32 %v1233, 7
        %v1235 = vsub.s32 %v1232, %v1234
        %v1236 = vrot.slane %v1229, %v1235
        %v1237 = vcombine.low %v1157, %v1158
        %v1239 = vunpack.c.l.s4 1983009808
        %v1240 = vunpack.c.0.s8 %v1239
        %v1241 = vlaneseq
        %v1242 = vshrl.u32 %v1241, 7
        %v1243 = vsub.s32 %v1240, %v1242
        %v1244 = vrot.slane %v1237, %v1243
        %v1245 = vcombine.low %v1149, %v1156
        %v1247 = vunpack.c.l.s4 1983009808
        %v1248 = vunpack.c.0.s8 %v1247
        %v1249 = vlaneseq
        %v1250 = vshrl.u32 %v1249, 7
        %v1251 = vsub.s32 %v1248, %v1250
        %v1252 = vrot.slane %v1245, %v1251
        %v1253 = vcombine.low %v1159, %v1160
        %v1255 = vunpack.c.l.s4 1983009808
        %v1256 = vunpack.c.0.s8 %v1255
        %v1257 = vlaneseq
        %v1258 = vshrl.u32 %v1257, 7
        %v1259 = vsub.s32 %v1256, %v1258
        %v1260 = vrot.slane %v1253, %v1259
        %v1261 = vcombine.low %v1236, %v1244
        %v1262 = vcombine.high %v1236, %v1244
        %v1264 = vunpack.c.l.s4 1934713408
        %v1265 = vunpack.c.0.s8 %v1264
        %v1266 = vlaneseq
        %v1267 = vshrl.u32 %v1266, 7
        %v1268 = vsub.s32 %v1265, %v1267
        %v1269 = vrot.slane %v1261, %v1268
        %v1271 = vunpack.c.l.s4 1934713408
        %v1272 = vunpack.c.0.s8 %v1271
        %v1273 = vlaneseq
        %v1274 = vshrl.u32 %v1273, 7
        %v1275 = vsub.s32 %v1272, %v1274
        %v1276 = vrot.slane %v1262, %v1275
        %v1277 = vcombine.low %v1252, %v1260
        %v1278 = vcombine.high %v1252, %v1260
        %v1280 = vunpack.c.l.s4 1934713408
        %v1281 = vunpack.c.0.s8 %v1280
        %v1282 = vlaneseq
        %v1283 = vshrl.u32 %v1282, 7
        %v1284 = vsub.s32 %v1281, %v1283
        %v1285 = vrot.slane %v1277, %v1284
        %v1287 = vunpack.c.l.s4 1934713408
        %v1288 = vunpack.c.0.s8 %v1287
        %v1289 = vlaneseq
        %v1290 = vshrl.u32 %v1289, 7
        %v1291 = vsub.s32 %v1288, %v1290
        %v1292 = vrot.slane %v1278, %v1291
        %v1293 = vcombine.low %v1269, %v1285
        %v1294 = vcombine.high %v1269, %v1285
        %v1295 = vcombine.low %v1276, %v1292
        %v1296 = vcombine.high %v1276, %v1292
        %v1297 = vpack.c.bf16 %v1293, %v1225
        %v1298 = vpack.c.bf16 %v1294, %v1226
        %v1299 = vpack.c.bf16 %v1295, %v1227
        %v1300 = vpack.c.bf16 %v1296, %v1228
        %1303 = vrot.lane.b32.xlu0 %v687, 96
        %v1304 = vpop.permute.xlu0 %1303
        %1305 = vrot.lane.b32.xlu0 %v690, 96
        %v1306 = vpop.permute.xlu0 %1305
        %1309 = vrot.lane.b32.xlu0 %v687, 64
        %v1310 = vpop.permute.xlu0 %1309
        %1311 = vrot.lane.b32.xlu0 %v690, 64
        %v1312 = vpop.permute.xlu0 %1311
        %1315 = vrot.lane.b32.xlu0 %v687, 32
        %v1316 = vpop.permute.xlu0 %1315
        %1317 = vrot.lane.b32.xlu0 %v690, 32
        %v1318 = vpop.permute.xlu0 %1317
        %v1321 = vcombine.low %v687, %v1310
        %v1322 = vcombine.high %v687, %v1310
        %v1324 = vunpack.c.l.s4 1983009808
        %v1325 = vunpack.c.0.s8 %v1324
        %v1326 = vlaneseq
        %v1327 = vshrl.u32 %v1326, 7
        %v1328 = vsub.s32 %v1325, %v1327
        %v1329 = vrot.slane %v1321, %v1328
        %v1331 = vunpack.c.l.s4 1983009808
        %v1332 = vunpack.c.0.s8 %v1331
        %v1333 = vlaneseq
        %v1334 = vshrl.u32 %v1333, 7
        %v1335 = vsub.s32 %v1332, %v1334
        %v1336 = vrot.slane %v1322, %v1335
        %v1337 = vcombine.low %v1304, %v1316
        %v1338 = vcombine.high %v1304, %v1316
        %v1340 = vunpack.c.l.s4 1983009808
        %v1341 = vunpack.c.0.s8 %v1340
        %v1342 = vlaneseq
        %v1343 = vshrl.u32 %v1342, 7
        %v1344 = vsub.s32 %v1341, %v1343
        %v1345 = vrot.slane %v1337, %v1344
        %v1347 = vunpack.c.l.s4 1983009808
        %v1348 = vunpack.c.0.s8 %v1347
        %v1349 = vlaneseq
        %v1350 = vshrl.u32 %v1349, 7
        %v1351 = vsub.s32 %v1348, %v1350
        %v1352 = vrot.slane %v1338, %v1351
        %v1353 = vcombine.low %v1329, %v1345
        %v1354 = vcombine.high %v1329, %v1345
        %v1356 = vunpack.c.l.s4 1934713408
        %v1357 = vunpack.c.0.s8 %v1356
        %v1358 = vlaneseq
        %v1359 = vshrl.u32 %v1358, 7
        %v1360 = vsub.s32 %v1357, %v1359
        %v1361 = vrot.slane %v1353, %v1360
        %v1363 = vunpack.c.l.s4 1934713408
        %v1364 = vunpack.c.0.s8 %v1363
        %v1365 = vlaneseq
        %v1366 = vshrl.u32 %v1365, 7
        %v1367 = vsub.s32 %v1364, %v1366
        %v1368 = vrot.slane %v1354, %v1367
        %v1369 = vcombine.low %v1336, %v1352
        %v1370 = vcombine.high %v1336, %v1352
        %v1372 = vunpack.c.l.s4 1934713408
        %v1373 = vunpack.c.0.s8 %v1372
        %v1374 = vlaneseq
        %v1375 = vshrl.u32 %v1374, 7
        %v1376 = vsub.s32 %v1373, %v1375
        %v1377 = vrot.slane %v1369, %v1376
        %v1379 = vunpack.c.l.s4 1934713408
        %v1380 = vunpack.c.0.s8 %v1379
        %v1381 = vlaneseq
        %v1382 = vshrl.u32 %v1381, 7
        %v1383 = vsub.s32 %v1380, %v1382
        %v1384 = vrot.slane %v1370, %v1383
        %v1385 = vcombine.high %v1361, 0.0
        %v1386 = vcombine.high %v1368, 0.0
        %v1387 = vcombine.high %v1377, 0.0
        %v1388 = vcombine.high %v1384, 0.0
        %v1389 = vcombine.low %v690, %v1312
        %v1390 = vcombine.high %v690, %v1312
        %v1392 = vunpack.c.l.s4 1983009808
        %v1393 = vunpack.c.0.s8 %v1392
        %v1394 = vlaneseq
        %v1395 = vshrl.u32 %v1394, 7
        %v1396 = vsub.s32 %v1393, %v1395
        %v1397 = vrot.slane %v1389, %v1396
        %v1399 = vunpack.c.l.s4 1983009808
        %v1400 = vunpack.c.0.s8 %v1399
        %v1401 = vlaneseq
        %v1402 = vshrl.u32 %v1401, 7
        %v1403 = vsub.s32 %v1400, %v1402
        %v1404 = vrot.slane %v1390, %v1403
        %v1405 = vcombine.low %v1306, %v1318
        %v1406 = vcombine.high %v1306, %v1318
        %v1408 = vunpack.c.l.s4 1983009808
        %v1409 = vunpack.c.0.s8 %v1408
        %v1410 = vlaneseq
        %v1411 = vshrl.u32 %v1410, 7
        %v1412 = vsub.s32 %v1409, %v1411
        %v1413 = vrot.slane %v1405, %v1412
        %v1415 = vunpack.c.l.s4 1983009808
        %v1416 = vunpack.c.0.s8 %v1415
        %v1417 = vlaneseq
        %v1418 = vshrl.u32 %v1417, 7
        %v1419 = vsub.s32 %v1416, %v1418
        %v1420 = vrot.slane %v1406, %v1419
        %v1421 = vcombine.low %v1397, %v1413
        %v1422 = vcombine.high %v1397, %v1413
        %v1424 = vunpack.c.l.s4 1934713408
        %v1425 = vunpack.c.0.s8 %v1424
        %v1426 = vlaneseq
        %v1427 = vshrl.u32 %v1426, 7
        %v1428 = vsub.s32 %v1425, %v1427
        %v1429 = vrot.slane %v1421, %v1428
        %v1431 = vunpack.c.l.s4 1934713408
        %v1432 = vunpack.c.0.s8 %v1431
        %v1433 = vlaneseq
        %v1434 = vshrl.u32 %v1433, 7
        %v1435 = vsub.s32 %v1432, %v1434
        %v1436 = vrot.slane %v1422, %v1435
        %v1437 = vcombine.low %v1404, %v1420
        %v1438 = vcombine.high %v1404, %v1420
        %v1440 = vunpack.c.l.s4 1934713408
        %v1441 = vunpack.c.0.s8 %v1440
        %v1442 = vlaneseq
        %v1443 = vshrl.u32 %v1442, 7
        %v1444 = vsub.s32 %v1441, %v1443
        %v1445 = vrot.slane %v1437, %v1444
        %v1447 = vunpack.c.l.s4 1934713408
        %v1448 = vunpack.c.0.s8 %v1447
        %v1449 = vlaneseq
        %v1450 = vshrl.u32 %v1449, 7
        %v1451 = vsub.s32 %v1448, %v1450
        %v1452 = vrot.slane %v1438, %v1451
        %v1453 = vcombine.high %v1429, 0.0
        %v1454 = vcombine.high %v1436, 0.0
        %v1455 = vcombine.high %v1445, 0.0
        %v1456 = vcombine.high %v1452, 0.0
        %v1457 = vcombine.low %v1361, %v1368
        %v1459 = vunpack.c.l.s4 1983009808
        %v1460 = vunpack.c.0.s8 %v1459
        %v1461 = vlaneseq
        %v1462 = vshrl.u32 %v1461, 7
        %v1463 = vsub.s32 %v1460, %v1462
        %v1464 = vrot.slane %v1457, %v1463
        %v1465 = vcombine.low %v1385, %v1386
        %v1467 = vunpack.c.l.s4 1983009808
        %v1468 = vunpack.c.0.s8 %v1467
        %v1469 = vlaneseq
        %v1470 = vshrl.u32 %v1469, 7
        %v1471 = vsub.s32 %v1468, %v1470
        %v1472 = vrot.slane %v1465, %v1471
        %v1473 = vcombine.low %v1377, %v1384
        %v1475 = vunpack.c.l.s4 1983009808
        %v1476 = vunpack.c.0.s8 %v1475
        %v1477 = vlaneseq
        %v1478 = vshrl.u32 %v1477, 7
        %v1479 = vsub.s32 %v1476, %v1478
        %v1480 = vrot.slane %v1473, %v1479
        %v1481 = vcombine.low %v1387, %v1388
        %v1483 = vunpack.c.l.s4 1983009808
        %v1484 = vunpack.c.0.s8 %v1483
        %v1485 = vlaneseq
        %v1486 = vshrl.u32 %v1485, 7
        %v1487 = vsub.s32 %v1484, %v1486
        %v1488 = vrot.slane %v1481, %v1487
        %v1489 = vcombine.low %v1464, %v1472
        %v1490 = vcombine.high %v1464, %v1472
        %v1492 = vunpack.c.l.s4 1934713408
        %v1493 = vunpack.c.0.s8 %v1492
        %v1494 = vlaneseq
        %v1495 = vshrl.u32 %v1494, 7
        %v1496 = vsub.s32 %v1493, %v1495
        %v1497 = vrot.slane %v1489, %v1496
        %v1499 = vunpack.c.l.s4 1934713408
        %v1500 = vunpack.c.0.s8 %v1499
        %v1501 = vlaneseq
        %v1502 = vshrl.u32 %v1501, 7
        %v1503 = vsub.s32 %v1500, %v1502
        %v1504 = vrot.slane %v1490, %v1503
        %v1505 = vcombine.low %v1480, %v1488
        %v1506 = vcombine.high %v1480, %v1488
        %v1508 = vunpack.c.l.s4 1934713408
        %v1509 = vunpack.c.0.s8 %v1508
        %v1510 = vlaneseq
        %v1511 = vshrl.u32 %v1510, 7
        %v1512 = vsub.s32 %v1509, %v1511
        %v1513 = vrot.slane %v1505, %v1512
        %v1515 = vunpack.c.l.s4 1934713408
        %v1516 = vunpack.c.0.s8 %v1515
        %v1517 = vlaneseq
        %v1518 = vshrl.u32 %v1517, 7
        %v1519 = vsub.s32 %v1516, %v1518
        %v1520 = vrot.slane %v1506, %v1519
        %v1521 = vcombine.low %v1497, %v1513
        %v1522 = vcombine.high %v1497, %v1513
        %v1523 = vcombine.low %v1504, %v1520
        %v1524 = vcombine.high %v1504, %v1520
        %v1525 = vcombine.low %v1429, %v1436
        %v1527 = vunpack.c.l.s4 1983009808
        %v1528 = vunpack.c.0.s8 %v1527
        %v1529 = vlaneseq
        %v1530 = vshrl.u32 %v1529, 7
        %v1531 = vsub.s32 %v1528, %v1530
        %v1532 = vrot.slane %v1525, %v1531
        %v1533 = vcombine.low %v1453, %v1454
        %v1535 = vunpack.c.l.s4 1983009808
        %v1536 = vunpack.c.0.s8 %v1535
        %v1537 = vlaneseq
        %v1538 = vshrl.u32 %v1537, 7
        %v1539 = vsub.s32 %v1536, %v1538
        %v1540 = vrot.slane %v1533, %v1539
        %v1541 = vcombine.low %v1445, %v1452
        %v1543 = vunpack.c.l.s4 1983009808
        %v1544 = vunpack.c.0.s8 %v1543
        %v1545 = vlaneseq
        %v1546 = vshrl.u32 %v1545, 7
        %v1547 = vsub.s32 %v1544, %v1546
        %v1548 = vrot.slane %v1541, %v1547
        %v1549 = vcombine.low %v1455, %v1456
        %v1551 = vunpack.c.l.s4 1983009808
        %v1552 = vunpack.c.0.s8 %v1551
        %v1553 = vlaneseq
        %v1554 = vshrl.u32 %v1553, 7
        %v1555 = vsub.s32 %v1552, %v1554
        %v1556 = vrot.slane %v1549, %v1555
        %v1557 = vcombine.low %v1532, %v1540
        %v1558 = vcombine.high %v1532, %v1540
        %v1560 = vunpack.c.l.s4 1934713408
        %v1561 = vunpack.c.0.s8 %v1560
        %v1562 = vlaneseq
        %v1563 = vshrl.u32 %v1562, 7
        %v1564 = vsub.s32 %v1561, %v1563
        %v1565 = vrot.slane %v1557, %v1564
        %v1567 = vunpack.c.l.s4 1934713408
        %v1568 = vunpack.c.0.s8 %v1567
        %v1569 = vlaneseq
        %v1570 = vshrl.u32 %v1569, 7
        %v1571 = vsub.s32 %v1568, %v1570
        %v1572 = vrot.slane %v1558, %v1571
        %v1573 = vcombine.low %v1548, %v1556
        %v1574 = vcombine.high %v1548, %v1556
        %v1576 = vunpack.c.l.s4 1934713408
        %v1577 = vunpack.c.0.s8 %v1576
        %v1578 = vlaneseq
        %v1579 = vshrl.u32 %v1578, 7
        %v1580 = vsub.s32 %v1577, %v1579
        %v1581 = vrot.slane %v1573, %v1580
        %v1583 = vunpack.c.l.s4 1934713408
        %v1584 = vunpack.c.0.s8 %v1583
        %v1585 = vlaneseq
        %v1586 = vshrl.u32 %v1585, 7
        %v1587 = vsub.s32 %v1584, %v1586
        %v1588 = vrot.slane %v1574, %v1587
        %v1589 = vcombine.low %v1565, %v1581
        %v1590 = vcombine.high %v1565, %v1581
        %v1591 = vcombine.low %v1572, %v1588
        %v1592 = vcombine.high %v1572, %v1588
        %v1593 = vpack.c.bf16 %v1589, %v1521
        %v1594 = vpack.c.bf16 %v1590, %v1522
        %v1595 = vpack.c.bf16 %v1591, %v1523
        %v1596 = vpack.c.bf16 %v1592, %v1524
        %vm1597 = vcmask 261120
        %v1599 = vsel %vm1597, %v1001, 0
        %v1602 = vsel %vm1597, %v1297, 0
        %1604 = vmatprep.subr.bf16.mxu0 0
        %1605 = vmatpush1.bf16.xpose.msra.mxu0 %v1602
        %1606 = vmatprep.subr.bf16.mxu0 0
        %1607 = vmatpush1.bf16.xpose.msra.mxu0 0
        %1608 = vmatprep.subr.bf16.mxu0 0
        %1609 = vmatpush1.bf16.xpose.msra.mxu0 0
        %1610 = vmatprep.subr.bf16.mxu0 0
        %1611 = vmatpush1.bf16.xpose.msra.mxu0 0
        %1612 = vmatprep.subr.bf16.mxu0 0
        %1613 = vmatpush1.bf16.xpose.msra.mxu0 0
        %1614 = vmatprep.subr.bf16.mxu0 0
        %1615 = vmatpush1.bf16.xpose.msra.mxu0 0
        %1616 = vmatprep.subr.bf16.mxu0 0
        %1617 = vmatpush1.bf16.xpose.msra.mxu0 0
        %1618 = vmatprep.subr.bf16.mxu0 0
        %1619 = vmatpush1.bf16.xpose.msra.mxu0 0
        %1620 = vmatprep.subr.bf16.mxu0 0
        %1621 = vmatpush1.bf16.xpose.msra.mxu0 0
        %1622 = vmatprep.subr.bf16.mxu0 0
        %1623 = vmatpush1.bf16.xpose.msra.mxu0 0
        %1624 = vmatprep.subr.bf16.mxu0 0
        %1625 = vmatpush1.bf16.xpose.msra.mxu0 0
        %1626 = vmatprep.subr.bf16.mxu0 0
        %1627 = vmatpush1.bf16.xpose.msra.mxu0 0
        %1628 = vmatprep.subr.bf16.mxu0 0
        %1629 = vmatpush1.bf16.xpose.msra.mxu0 0
        %1630 = vmatprep.subr.bf16.mxu0 0
        %1631 = vmatpush1.bf16.xpose.msra.mxu0 0
        %1632 = vmatprep.subr.bf16.mxu0 0
        %1633 = vmatpush1.bf16.xpose.msra.mxu0 0
        %1634 = vmatprep.subr.bf16.mxu0 0
        %1635 = vmatpush1.bf16.xpose.msra.mxu0 0
        %1636 = vmatprep.mubr.bf16.mxu0 0
        %1637 = vmatmul.mubr.bf16.gmra.mrb[0].mxu0 %v1599
        %v1638 = vpop.f32.mrb[0].mxu0
        %v1639 = vadd.f32 0.0, %v1638
        %v1640 = vpop.f32.mrb[0].mxu0
        %v1641 = vpop.f32.mrb[0].mxu0
        %v1642 = vadd.f32 0.0, %v1641
        %v1643 = vpop.f32.mrb[0].mxu0
        %1644 = vdwg.mxu0
        %v1646 = vsel %vm1597, %v1002, 0
        %v1649 = vsel %vm1597, %v1298, 0
        %1651 = vmatprep.subr.bf16.mxu0 0
        %1652 = vmatpush1.bf16.xpose.msra.mxu0 %v1649
        %1653 = vmatprep.subr.bf16.mxu0 0
        %1654 = vmatpush1.bf16.xpose.msra.mxu0 0
        %1655 = vmatprep.subr.bf16.mxu0 0
        %1656 = vmatpush1.bf16.xpose.msra.mxu0 0
        %1657 = vmatprep.subr.bf16.mxu0 0
        %1658 = vmatpush1.bf16.xpose.msra.mxu0 0
        %1659 = vmatprep.subr.bf16.mxu0 0
        %1660 = vmatpush1.bf16.xpose.msra.mxu0 0
        %1661 = vmatprep.subr.bf16.mxu0 0
        %1662 = vmatpush1.bf16.xpose.msra.mxu0 0
        %1663 = vmatprep.subr.bf16.mxu0 0
        %1664 = vmatpush1.bf16.xpose.msra.mxu0 0
        %1665 = vmatprep.subr.bf16.mxu0 0
        %1666 = vmatpush1.bf16.xpose.msra.mxu0 0
        %1667 = vmatprep.subr.bf16.mxu0 0
        %1668 = vmatpush1.bf16.xpose.msra.mxu0 0
        %1669 = vmatprep.subr.bf16.mxu0 0
        %1670 = vmatpush1.bf16.xpose.msra.mxu0 0
        %1671 = vmatprep.subr.bf16.mxu0 0
        %1672 = vmatpush1.bf16.xpose.msra.mxu0 0
        %1673 = vmatprep.subr.bf16.mxu0 0
        %1674 = vmatpush1.bf16.xpose.msra.mxu0 0
        %1675 = vmatprep.subr.bf16.mxu0 0
        %1676 = vmatpush1.bf16.xpose.msra.mxu0 0
        %1677 = vmatprep.subr.bf16.mxu0 0
        %1678 = vmatpush1.bf16.xpose.msra.mxu0 0
        %1679 = vmatprep.subr.bf16.mxu0 0
        %1680 = vmatpush1.bf16.xpose.msra.mxu0 0
        %1681 = vmatprep.subr.bf16.mxu0 0
        %1682 = vmatpush1.bf16.xpose.msra.mxu0 0
        %1683 = vmatprep.mubr.bf16.mxu0 0
        %1684 = vmatmul.mubr.bf16.gmra.mrb[0].mxu0 %v1646
        %v1685 = vpop.f32.mrb[0].mxu0
        %v1686 = vadd.f32 0.0, %v1685
        %v1687 = vpop.f32.mrb[0].mxu0
        %v1688 = vpop.f32.mrb[0].mxu0
        %v1689 = vadd.f32 0.0, %v1688
        %v1690 = vpop.f32.mrb[0].mxu0
        %1691 = vdwg.mxu0
        %v1693 = vsel %vm1597, %v1003, 0
        %v1696 = vsel %vm1597, %v1299, 0
        %1698 = vmatprep.subr.bf16.mxu0 0
        %1699 = vmatpush1.bf16.xpose.msra.mxu0 %v1696
        %1700 = vmatprep.subr.bf16.mxu0 0
        %1701 = vmatpush1.bf16.xpose.msra.mxu0 0
        %1702 = vmatprep.subr.bf16.mxu0 0
        %1703 = vmatpush1.bf16.xpose.msra.mxu0 0
        %1704 = vmatprep.subr.bf16.mxu0 0
        %1705 = vmatpush1.bf16.xpose.msra.mxu0 0
        %1706 = vmatprep.subr.bf16.mxu0 0
        %1707 = vmatpush1.bf16.xpose.msra.mxu0 0
        %1708 = vmatprep.subr.bf16.mxu0 0
        %1709 = vmatpush1.bf16.xpose.msra.mxu0 0
        %1710 = vmatprep.subr.bf16.mxu0 0
        %1711 = vmatpush1.bf16.xpose.msra.mxu0 0
        %1712 = vmatprep.subr.bf16.mxu0 0
        %1713 = vmatpush1.bf16.xpose.msra.mxu0 0
        %1714 = vmatprep.subr.bf16.mxu0 0
        %1715 = vmatpush1.bf16.xpose.msra.mxu0 0
        %1716 = vmatprep.subr.bf16.mxu0 0
        %1717 = vmatpush1.bf16.xpose.msra.mxu0 0
        %1718 = vmatprep.subr.bf16.mxu0 0
        %1719 = vmatpush1.bf16.xpose.msra.mxu0 0
        %1720 = vmatprep.subr.bf16.mxu0 0
        %1721 = vmatpush1.bf16.xpose.msra.mxu0 0
        %1722 = vmatprep.subr.bf16.mxu0 0
        %1723 = vmatpush1.bf16.xpose.msra.mxu0 0
        %1724 = vmatprep.subr.bf16.mxu0 0
        %1725 = vmatpush1.bf16.xpose.msra.mxu0 0
        %1726 = vmatprep.subr.bf16.mxu0 0
        %1727 = vmatpush1.bf16.xpose.msra.mxu0 0
        %1728 = vmatprep.subr.bf16.mxu0 0
        %1729 = vmatpush1.bf16.xpose.msra.mxu0 0
        %1730 = vmatprep.mubr.bf16.mxu0 0
        %1731 = vmatmul.mubr.bf16.gmra.mrb[0].mxu0 %v1693
        %v1732 = vpop.f32.mrb[0].mxu0
        %v1733 = vadd.f32 0.0, %v1732
        %v1734 = vpop.f32.mrb[0].mxu0
        %v1735 = vpop.f32.mrb[0].mxu0
        %v1736 = vadd.f32 0.0, %v1735
        %v1737 = vpop.f32.mrb[0].mxu0
        %1738 = vdwg.mxu0
        %v1740 = vsel %vm1597, %v1004, 0
        %v1743 = vsel %vm1597, %v1300, 0
        %1745 = vmatprep.subr.bf16.mxu0 0
        %1746 = vmatpush1.bf16.xpose.msra.mxu0 %v1743
        %1747 = vmatprep.subr.bf16.mxu0 0
        %1748 = vmatpush1.bf16.xpose.msra.mxu0 0
        %1749 = vmatprep.subr.bf16.mxu0 0
        %1750 = vmatpush1.bf16.xpose.msra.mxu0 0
        %1751 = vmatprep.subr.bf16.mxu0 0
        %1752 = vmatpush1.bf16.xpose.msra.mxu0 0
        %1753 = vmatprep.subr.bf16.mxu0 0
        %1754 = vmatpush1.bf16.xpose.msra.mxu0 0
        %1755 = vmatprep.subr.bf16.mxu0 0
        %1756 = vmatpush1.bf16.xpose.msra.mxu0 0
        %1757 = vmatprep.subr.bf16.mxu0 0
        %1758 = vmatpush1.bf16.xpose.msra.mxu0 0
        %1759 = vmatprep.subr.bf16.mxu0 0
        %1760 = vmatpush1.bf16.xpose.msra.mxu0 0
        %1761 = vmatprep.subr.bf16.mxu0 0
        %1762 = vmatpush1.bf16.xpose.msra.mxu0 0
        %1763 = vmatprep.subr.bf16.mxu0 0
        %1764 = vmatpush1.bf16.xpose.msra.mxu0 0
        %1765 = vmatprep.subr.bf16.mxu0 0
        %1766 = vmatpush1.bf16.xpose.msra.mxu0 0
        %1767 = vmatprep.subr.bf16.mxu0 0
        %1768 = vmatpush1.bf16.xpose.msra.mxu0 0
        %1769 = vmatprep.subr.bf16.mxu0 0
        %1770 = vmatpush1.bf16.xpose.msra.mxu0 0
        %1771 = vmatprep.subr.bf16.mxu0 0
        %1772 = vmatpush1.bf16.xpose.msra.mxu0 0
        %1773 = vmatprep.subr.bf16.mxu0 0
        %1774 = vmatpush1.bf16.xpose.msra.mxu0 0
        %1775 = vmatprep.subr.bf16.mxu0 0
        %1776 = vmatpush1.bf16.xpose.msra.mxu0 0
        %1777 = vmatprep.mubr.bf16.mxu0 0
        %1778 = vmatmul.mubr.bf16.gmra.mrb[0].mxu0 %v1740
        %v1779 = vpop.f32.mrb[0].mxu0
        %v1780 = vadd.f32 0.0, %v1779
        %v1781 = vpop.f32.mrb[0].mxu0
        %v1782 = vpop.f32.mrb[0].mxu0
        %v1783 = vadd.f32 0.0, %v1782
        %v1784 = vpop.f32.mrb[0].mxu0
        %1785 = vdwg.mxu0
        %v1786 = vlaneseq
        %v1787 = vshrl.u32 %v1786, 7
        %v1788 = vadd.s32 %v1787, 8
        %v1789 = vlaneseq
        %v1790 = vand.u32 %v1789, 127
        %vm1791 = vcmp.le.s32.totalorder %v1790, %v1787
        %vm1792 = vcmp.le.s32.totalorder %v1790, %v1788
        %v1793 = vsel %vm1791, 1, 0
        %v1794 = vsel %vm1792, 1, 0
        %vm1795 = vcmp.eq.s32.totalorder %v1793, 1
        %vm1796 = vcmp.eq.s32.totalorder %v1794, 1
        %v1797 = vsel %vm1795, %v1639, -1e+30
        %v1798 = vsel %vm1796, %v1642, -1e+30
        %v1799 = vsel %vm1795, %v1686, -1e+30
        %v1800 = vsel %vm1796, %v1689, -1e+30
        %v1801 = vsel %vm1795, %v1733, -1e+30
        %v1802 = vsel %vm1796, %v1736, -1e+30
        %v1803 = vsel %vm1795, %v1780, -1e+30
        %v1804 = vsel %vm1796, %v1783, -1e+30
        %vm1805 = vcmask 130048
        %v1806 = vsel %vm1805, %v1797, -inf
        %1807 = vmax.xlane.f32.xlu0 %v1806
        %v1808 = vpop.xlane.xlu0 %1807
        %v1809 = vsel %vm1805, %v1798, -inf
        %1810 = vmax.xlane.f32.xlu0 %v1809
        %v1811 = vpop.xlane.xlu0 %1810
        %v1812 = vsel %vm1805, %v1799, -inf
        %1813 = vmax.xlane.f32.xlu0 %v1812
        %v1814 = vpop.xlane.xlu0 %1813
        %v1815 = vsel %vm1805, %v1800, -inf
        %1816 = vmax.xlane.f32.xlu0 %v1815
        %v1817 = vpop.xlane.xlu0 %1816
        %v1818 = vsel %vm1805, %v1801, -inf
        %1819 = vmax.xlane.f32.xlu0 %v1818
        %v1820 = vpop.xlane.xlu0 %1819
        %v1821 = vsel %vm1805, %v1802, -inf
        %1822 = vmax.xlane.f32.xlu0 %v1821
        %v1823 = vpop.xlane.xlu0 %1822
        %v1824 = vsel %vm1805, %v1803, -inf
        %1825 = vmax.xlane.f32.xlu0 %v1824
        %v1826 = vpop.xlane.xlu0 %1825
        %v1827 = vsel %vm1805, %v1804, -inf
        %1828 = vmax.xlane.f32.xlu0 %v1827
        %v1829 = vpop.xlane.xlu0 %1828
        %v1830 = vsub.f32 %v1797, %v1808
        %v1831 = vsub.f32 %v1798, %v1811
        %v1832 = vsub.f32 %v1799, %v1814
        %v1833 = vsub.f32 %v1800, %v1817
        %v1834 = vsub.f32 %v1801, %v1820
        %v1835 = vsub.f32 %v1802, %v1823
        %v1836 = vsub.f32 %v1803, %v1826
        %v1837 = vsub.f32 %v1804, %v1829
        %v1838 = vmul.f32 %v1830, 1.442695
        %v1839 = vpow.pop %v1838
        %v1840 = vmul.f32 %v1831, 1.442695
        %v1841 = vpow.pop %v1840
        %v1842 = vmul.f32 %v1832, 1.442695
        %v1843 = vpow.pop %v1842
        %v1844 = vmul.f32 %v1833, 1.442695
        %v1845 = vpow.pop %v1844
        %v1846 = vmul.f32 %v1834, 1.442695
        %v1847 = vpow.pop %v1846
        %v1848 = vmul.f32 %v1835, 1.442695
        %v1849 = vpow.pop %v1848
        %v1850 = vmul.f32 %v1836, 1.442695
        %v1851 = vpow.pop %v1850
        %v1852 = vmul.f32 %v1837, 1.442695
        %v1853 = vpow.pop %v1852
        %v1854 = vsel %vm1805, %v1839, 0.0
        %1855 = vadd.xlane.f32.xlu0 %v1854
        %v1856 = vpop.xlane.xlu0 %1855
        %v1857 = vsel %vm1805, %v1841, 0.0
        %1858 = vadd.xlane.f32.xlu0 %v1857
        %v1859 = vpop.xlane.xlu0 %1858
        %v1860 = vsel %vm1805, %v1843, 0.0
        %1861 = vadd.xlane.f32.xlu0 %v1860
        %v1862 = vpop.xlane.xlu0 %1861
        %v1863 = vsel %vm1805, %v1845, 0.0
        %1864 = vadd.xlane.f32.xlu0 %v1863
        %v1865 = vpop.xlane.xlu0 %1864
        %v1866 = vsel %vm1805, %v1847, 0.0
        %1867 = vadd.xlane.f32.xlu0 %v1866
        %v1868 = vpop.xlane.xlu0 %1867
        %v1869 = vsel %vm1805, %v1849, 0.0
        %1870 = vadd.xlane.f32.xlu0 %v1869
        %v1871 = vpop.xlane.xlu0 %1870
        %v1872 = vsel %vm1805, %v1851, 0.0
        %1873 = vadd.xlane.f32.xlu0 %v1872
        %v1874 = vpop.xlane.xlu0 %1873
        %v1875 = vsel %vm1805, %v1853, 0.0
        %1876 = vadd.xlane.f32.xlu0 %v1875
        %v1877 = vpop.xlane.xlu0 %1876
        %v1878 = vpack.c.bf16 %v1841, %v1839
        %v1879 = vpack.c.bf16 %v1845, %v1843
        %v1880 = vpack.c.bf16 %v1849, %v1847
        %v1881 = vpack.c.bf16 %v1853, %v1851
        %v1883 = vsel %vm1805, %v1878, 0
        %1885 = vmatprep.subr.bf16.mxu0 0
        %1886 = vmatpush1.bf16.msra.mxu0 %v1593
        %1887 = vmatprep.subr.bf16.mxu0 0
        %1888 = vmatpush1.bf16.msra.mxu0 0
        %1889 = vmatprep.subr.bf16.mxu0 0
        %1890 = vmatpush1.bf16.msra.mxu0 0
        %1891 = vmatprep.subr.bf16.mxu0 0
        %1892 = vmatpush1.bf16.msra.mxu0 0
        %1893 = vmatprep.subr.bf16.mxu0 0
        %1894 = vmatpush1.bf16.msra.mxu0 0
        %1895 = vmatprep.subr.bf16.mxu0 0
        %1896 = vmatpush1.bf16.msra.mxu0 0
        %1897 = vmatprep.subr.bf16.mxu0 0
        %1898 = vmatpush1.bf16.msra.mxu0 0
        %1899 = vmatprep.subr.bf16.mxu0 0
        %1900 = vmatpush1.bf16.msra.mxu0 0
        %1901 = vmatprep.subr.bf16.mxu0 0
        %1902 = vmatpush1.bf16.msra.mxu0 0
        %1903 = vmatprep.subr.bf16.mxu0 0
        %1904 = vmatpush1.bf16.msra.mxu0 0
        %1905 = vmatprep.subr.bf16.mxu0 0
        %1906 = vmatpush1.bf16.msra.mxu0 0
        %1907 = vmatprep.subr.bf16.mxu0 0
        %1908 = vmatpush1.bf16.msra.mxu0 0
        %1909 = vmatprep.subr.bf16.mxu0 0
        %1910 = vmatpush1.bf16.msra.mxu0 0
        %1911 = vmatprep.subr.bf16.mxu0 0
        %1912 = vmatpush1.bf16.msra.mxu0 0
        %1913 = vmatprep.subr.bf16.mxu0 0
        %1914 = vmatpush1.bf16.msra.mxu0 0
        %1915 = vmatprep.subr.bf16.mxu0 0
        %1916 = vmatpush1.bf16.msra.mxu0 0
        %1917 = vmatprep.mubr.bf16.mxu0 0
        %1918 = vmatmul.mubr.bf16.gmra.mrb[0].mxu0 %v1883
        %v1919 = vpop.f32.mrb[0].mxu0
        %v1920 = vadd.f32 0.0, %v1919
        %v1921 = vpop.f32.mrb[0].mxu0
        %v1922 = vpop.f32.mrb[0].mxu0
        %v1923 = vadd.f32 0.0, %v1922
        %v1924 = vpop.f32.mrb[0].mxu0
        %1925 = vdwg.mxu0
        %v1927 = vsel %vm1805, %v1879, 0
        %1929 = vmatprep.subr.bf16.mxu0 0
        %1930 = vmatpush1.bf16.msra.mxu0 %v1594
        %1931 = vmatprep.subr.bf16.mxu0 0
        %1932 = vmatpush1.bf16.msra.mxu0 0
        %1933 = vmatprep.subr.bf16.mxu0 0
        %1934 = vmatpush1.bf16.msra.mxu0 0
        %1935 = vmatprep.subr.bf16.mxu0 0
        %1936 = vmatpush1.bf16.msra.mxu0 0
        %1937 = vmatprep.subr.bf16.mxu0 0
        %1938 = vmatpush1.bf16.msra.mxu0 0
        %1939 = vmatprep.subr.bf16.mxu0 0
        %1940 = vmatpush1.bf16.msra.mxu0 0
        %1941 = vmatprep.subr.bf16.mxu0 0
        %1942 = vmatpush1.bf16.msra.mxu0 0
        %1943 = vmatprep.subr.bf16.mxu0 0
        %1944 = vmatpush1.bf16.msra.mxu0 0
        %1945 = vmatprep.subr.bf16.mxu0 0
        %1946 = vmatpush1.bf16.msra.mxu0 0
        %1947 = vmatprep.subr.bf16.mxu0 0
        %1948 = vmatpush1.bf16.msra.mxu0 0
        %1949 = vmatprep.subr.bf16.mxu0 0
        %1950 = vmatpush1.bf16.msra.mxu0 0
        %1951 = vmatprep.subr.bf16.mxu0 0
        %1952 = vmatpush1.bf16.msra.mxu0 0
        %1953 = vmatprep.subr.bf16.mxu0 0
        %1954 = vmatpush1.bf16.msra.mxu0 0
        %1955 = vmatprep.subr.bf16.mxu0 0
        %1956 = vmatpush1.bf16.msra.mxu0 0
        %1957 = vmatprep.subr.bf16.mxu0 0
        %1958 = vmatpush1.bf16.msra.mxu0 0
        %1959 = vmatprep.subr.bf16.mxu0 0
        %1960 = vmatpush1.bf16.msra.mxu0 0
        %1961 = vmatprep.mubr.bf16.mxu0 0
        %1962 = vmatmul.mubr.bf16.gmra.mrb[0].mxu0 %v1927
        %v1963 = vpop.f32.mrb[0].mxu0
        %v1964 = vadd.f32 0.0, %v1963
        %v1965 = vpop.f32.mrb[0].mxu0
        %v1966 = vpop.f32.mrb[0].mxu0
        %v1967 = vadd.f32 0.0, %v1966
        %v1968 = vpop.f32.mrb[0].mxu0
        %1969 = vdwg.mxu0
        %v1971 = vsel %vm1805, %v1880, 0
        %1973 = vmatprep.subr.bf16.mxu0 0
        %1974 = vmatpush1.bf16.msra.mxu0 %v1595
        %1975 = vmatprep.subr.bf16.mxu0 0
        %1976 = vmatpush1.bf16.msra.mxu0 0
        %1977 = vmatprep.subr.bf16.mxu0 0
        %1978 = vmatpush1.bf16.msra.mxu0 0
        %1979 = vmatprep.subr.bf16.mxu0 0
        %1980 = vmatpush1.bf16.msra.mxu0 0
        %1981 = vmatprep.subr.bf16.mxu0 0
        %1982 = vmatpush1.bf16.msra.mxu0 0
        %1983 = vmatprep.subr.bf16.mxu0 0
        %1984 = vmatpush1.bf16.msra.mxu0 0
        %1985 = vmatprep.subr.bf16.mxu0 0
        %1986 = vmatpush1.bf16.msra.mxu0 0
        %1987 = vmatprep.subr.bf16.mxu0 0
        %1988 = vmatpush1.bf16.msra.mxu0 0
        %1989 = vmatprep.subr.bf16.mxu0 0
        %1990 = vmatpush1.bf16.msra.mxu0 0
        %1991 = vmatprep.subr.bf16.mxu0 0
        %1992 = vmatpush1.bf16.msra.mxu0 0
        %1993 = vmatprep.subr.bf16.mxu0 0
        %1994 = vmatpush1.bf16.msra.mxu0 0
        %1995 = vmatprep.subr.bf16.mxu0 0
        %1996 = vmatpush1.bf16.msra.mxu0 0
        %1997 = vmatprep.subr.bf16.mxu0 0
        %1998 = vmatpush1.bf16.msra.mxu0 0
        %1999 = vmatprep.subr.bf16.mxu0 0
        %2000 = vmatpush1.bf16.msra.mxu0 0
        %2001 = vmatprep.subr.bf16.mxu0 0
        %2002 = vmatpush1.bf16.msra.mxu0 0
        %2003 = vmatprep.subr.bf16.mxu0 0
        %2004 = vmatpush1.bf16.msra.mxu0 0
        %2005 = vmatprep.mubr.bf16.mxu0 0
        %2006 = vmatmul.mubr.bf16.gmra.mrb[0].mxu0 %v1971
        %v2007 = vpop.f32.mrb[0].mxu0
        %v2008 = vadd.f32 0.0, %v2007
        %v2009 = vpop.f32.mrb[0].mxu0
        %v2010 = vpop.f32.mrb[0].mxu0
        %v2011 = vadd.f32 0.0, %v2010
        %v2012 = vpop.f32.mrb[0].mxu0
        %2013 = vdwg.mxu0
        %v2015 = vsel %vm1805, %v1881, 0
        %2017 = vmatprep.subr.bf16.mxu0 0
        %2018 = vmatpush1.bf16.msra.mxu0 %v1596
        %2019 = vmatprep.subr.bf16.mxu0 0
        %2020 = vmatpush1.bf16.msra.mxu0 0
        %2021 = vmatprep.subr.bf16.mxu0 0
        %2022 = vmatpush1.bf16.msra.mxu0 0
        %2023 = vmatprep.subr.bf16.mxu0 0
        %2024 = vmatpush1.bf16.msra.mxu0 0
        %2025 = vmatprep.subr.bf16.mxu0 0
        %2026 = vmatpush1.bf16.msra.mxu0 0
        %2027 = vmatprep.subr.bf16.mxu0 0
        %2028 = vmatpush1.bf16.msra.mxu0 0
        %2029 = vmatprep.subr.bf16.mxu0 0
        %2030 = vmatpush1.bf16.msra.mxu0 0
        %2031 = vmatprep.subr.bf16.mxu0 0
        %2032 = vmatpush1.bf16.msra.mxu0 0
        %2033 = vmatprep.subr.bf16.mxu0 0
        %2034 = vmatpush1.bf16.msra.mxu0 0
        %2035 = vmatprep.subr.bf16.mxu0 0
        %2036 = vmatpush1.bf16.msra.mxu0 0
        %2037 = vmatprep.subr.bf16.mxu0 0
        %2038 = vmatpush1.bf16.msra.mxu0 0
        %2039 = vmatprep.subr.bf16.mxu0 0
        %2040 = vmatpush1.bf16.msra.mxu0 0
        %2041 = vmatprep.subr.bf16.mxu0 0
        %2042 = vmatpush1.bf16.msra.mxu0 0
        %2043 = vmatprep.subr.bf16.mxu0 0
        %2044 = vmatpush1.bf16.msra.mxu0 0
        %2045 = vmatprep.subr.bf16.mxu0 0
        %2046 = vmatpush1.bf16.msra.mxu0 0
        %2047 = vmatprep.subr.bf16.mxu0 0
        %2048 = vmatpush1.bf16.msra.mxu0 0
        %2049 = vmatprep.mubr.bf16.mxu0 0
        %2050 = vmatmul.mubr.bf16.gmra.mrb[0].mxu0 %v2015
        %v2051 = vpop.f32.mrb[0].mxu0
        %v2052 = vadd.f32 0.0, %v2051
        %v2053 = vpop.f32.mrb[0].mxu0
        %v2054 = vpop.f32.mrb[0].mxu0
        %v2055 = vadd.f32 0.0, %v2054
        %v2056 = vpop.f32.mrb[0].mxu0
        %2057 = vdwg.mxu0
        %v2058 = vrcp.pop %v1856
        %v2059 = vrcp.pop %v1859
        %v2060 = vrcp.pop %v1862
        %v2061 = vrcp.pop %v1865
        %v2062 = vrcp.pop %v1868
        %v2063 = vrcp.pop %v1871
        %v2064 = vrcp.pop %v1874
        %v2065 = vrcp.pop %v1877
        %v2066 = vmul.f32 %v1920, %v2058
        %v2067 = vmul.f32 %v1923, %v2059
        %v2068 = vmul.f32 %v1964, %v2060
        %v2069 = vmul.f32 %v1967, %v2061
        %v2070 = vmul.f32 %v2008, %v2062
        %v2071 = vmul.f32 %v2011, %v2063
        %v2072 = vmul.f32 %v2052, %v2064
        %v2073 = vmul.f32 %v2055, %v2065
        %v2074 = vcombine.low %v2066, %v2070
        %v2075 = vcombine.high %v2066, %v2070
        %v2077 = vunpack.c.l.s4 1983009808
        %v2078 = vunpack.c.0.s8 %v2077
        %v2079 = vlaneseq
        %v2080 = vshrl.u32 %v2079, 7
        %v2081 = vsub.s32 %v2078, %v2080
        %v2082 = vrot.slane %v2074, %v2081
        %v2084 = vunpack.c.l.s4 1983009808
        %v2085 = vunpack.c.0.s8 %v2084
        %v2086 = vlaneseq
        %v2087 = vshrl.u32 %v2086, 7
        %v2088 = vsub.s32 %v2085, %v2087
        %v2089 = vrot.slane %v2075, %v2088
        %v2090 = vcombine.low %v2068, %v2072
        %v2091 = vcombine.high %v2068, %v2072
        %v2093 = vunpack.c.l.s4 1983009808
        %v2094 = vunpack.c.0.s8 %v2093
        %v2095 = vlaneseq
        %v2096 = vshrl.u32 %v2095, 7
        %v2097 = vsub.s32 %v2094, %v2096
        %v2098 = vrot.slane %v2090, %v2097
        %v2100 = vunpack.c.l.s4 1983009808
        %v2101 = vunpack.c.0.s8 %v2100
        %v2102 = vlaneseq
        %v2103 = vshrl.u32 %v2102, 7
        %v2104 = vsub.s32 %v2101, %v2103
        %v2105 = vrot.slane %v2091, %v2104
        %v2106 = vcombine.low %v2082, %v2098
        %v2107 = vcombine.high %v2082, %v2098
        %v2109 = vunpack.c.l.s4 1934713408
        %v2110 = vunpack.c.0.s8 %v2109
        %v2111 = vlaneseq
        %v2112 = vshrl.u32 %v2111, 7
        %v2113 = vsub.s32 %v2110, %v2112
        %v2114 = vrot.slane %v2106, %v2113
        %v2116 = vunpack.c.l.s4 1934713408
        %v2117 = vunpack.c.0.s8 %v2116
        %v2118 = vlaneseq
        %v2119 = vshrl.u32 %v2118, 7
        %v2120 = vsub.s32 %v2117, %v2119
        %v2121 = vrot.slane %v2107, %v2120
        %v2122 = vcombine.low %v2089, %v2105
        %v2123 = vcombine.high %v2089, %v2105
        %v2125 = vunpack.c.l.s4 1934713408
        %v2126 = vunpack.c.0.s8 %v2125
        %v2127 = vlaneseq
        %v2128 = vshrl.u32 %v2127, 7
        %v2129 = vsub.s32 %v2126, %v2128
        %v2130 = vrot.slane %v2122, %v2129
        %v2132 = vunpack.c.l.s4 1934713408
        %v2133 = vunpack.c.0.s8 %v2132
        %v2134 = vlaneseq
        %v2135 = vshrl.u32 %v2134, 7
        %v2136 = vsub.s32 %v2133, %v2135
        %v2137 = vrot.slane %v2123, %v2136
        %v2138 = vcombine.high %v2114, 0.0
        %v2139 = vcombine.high %v2121, 0.0
        %v2140 = vcombine.high %v2130, 0.0
        %v2141 = vcombine.high %v2137, 0.0
        %v2142 = vcombine.low %v2067, %v2071
        %v2143 = vcombine.high %v2067, %v2071
        %v2145 = vunpack.c.l.s4 1983009808
        %v2146 = vunpack.c.0.s8 %v2145
        %v2147 = vlaneseq
        %v2148 = vshrl.u32 %v2147, 7
        %v2149 = vsub.s32 %v2146, %v2148
        %v2150 = vrot.slane %v2142, %v2149
        %v2152 = vunpack.c.l.s4 1983009808
        %v2153 = vunpack.c.0.s8 %v2152
        %v2154 = vlaneseq
        %v2155 = vshrl.u32 %v2154, 7
        %v2156 = vsub.s32 %v2153, %v2155
        %v2157 = vrot.slane %v2143, %v2156
        %v2158 = vcombine.low %v2069, %v2073
        %v2159 = vcombine.high %v2069, %v2073
        %v2161 = vunpack.c.l.s4 1983009808
        %v2162 = vunpack.c.0.s8 %v2161
        %v2163 = vlaneseq
        %v2164 = vshrl.u32 %v2163, 7
        %v2165 = vsub.s32 %v2162, %v2164
        %v2166 = vrot.slane %v2158, %v2165
        %v2168 = vunpack.c.l.s4 1983009808
        %v2169 = vunpack.c.0.s8 %v2168
        %v2170 = vlaneseq
        %v2171 = vshrl.u32 %v2170, 7
        %v2172 = vsub.s32 %v2169, %v2171
        %v2173 = vrot.slane %v2159, %v2172
        %v2174 = vcombine.low %v2150, %v2166
        %v2175 = vcombine.high %v2150, %v2166
        %v2177 = vunpack.c.l.s4 1934713408
        %v2178 = vunpack.c.0.s8 %v2177
        %v2179 = vlaneseq
        %v2180 = vshrl.u32 %v2179, 7
        %v2181 = vsub.s32 %v2178, %v2180
        %v2182 = vrot.slane %v2174, %v2181
        %v2184 = vunpack.c.l.s4 1934713408
        %v2185 = vunpack.c.0.s8 %v2184
        %v2186 = vlaneseq
        %v2187 = vshrl.u32 %v2186, 7
        %v2188 = vsub.s32 %v2185, %v2187
        %v2189 = vrot.slane %v2175, %v2188
        %v2190 = vcombine.low %v2157, %v2173
        %v2191 = vcombine.high %v2157, %v2173
        %v2193 = vunpack.c.l.s4 1934713408
        %v2194 = vunpack.c.0.s8 %v2193
        %v2195 = vlaneseq
        %v2196 = vshrl.u32 %v2195, 7
        %v2197 = vsub.s32 %v2194, %v2196
        %v2198 = vrot.slane %v2190, %v2197
        %v2200 = vunpack.c.l.s4 1934713408
        %v2201 = vunpack.c.0.s8 %v2200
        %v2202 = vlaneseq
        %v2203 = vshrl.u32 %v2202, 7
        %v2204 = vsub.s32 %v2201, %v2203
        %v2205 = vrot.slane %v2191, %v2204
        %v2206 = vcombine.high %v2182, 0.0
        %v2207 = vcombine.high %v2189, 0.0
        %v2208 = vcombine.high %v2198, 0.0
        %v2209 = vcombine.high %v2205, 0.0
        %v2210 = vcombine.low %v2114, %v2121
        %v2212 = vunpack.c.l.s4 1983009808
        %v2213 = vunpack.c.0.s8 %v2212
        %v2214 = vlaneseq
        %v2215 = vshrl.u32 %v2214, 7
        %v2216 = vsub.s32 %v2213, %v2215
        %v2217 = vrot.slane %v2210, %v2216
        %v2218 = vcombine.low %v2138, %v2139
        %v2220 = vunpack.c.l.s4 1983009808
        %v2221 = vunpack.c.0.s8 %v2220
        %v2222 = vlaneseq
        %v2223 = vshrl.u32 %v2222, 7
        %v2224 = vsub.s32 %v2221, %v2223
        %v2225 = vrot.slane %v2218, %v2224
        %v2226 = vcombine.low %v2130, %v2137
        %v2228 = vunpack.c.l.s4 1983009808
        %v2229 = vunpack.c.0.s8 %v2228
        %v2230 = vlaneseq
        %v2231 = vshrl.u32 %v2230, 7
        %v2232 = vsub.s32 %v2229, %v2231
        %v2233 = vrot.slane %v2226, %v2232
        %v2234 = vcombine.low %v2140, %v2141
        %v2236 = vunpack.c.l.s4 1983009808
        %v2237 = vunpack.c.0.s8 %v2236
        %v2238 = vlaneseq
        %v2239 = vshrl.u32 %v2238, 7
        %v2240 = vsub.s32 %v2237, %v2239
        %v2241 = vrot.slane %v2234, %v2240
        %v2242 = vcombine.low %v2217, %v2225
        %v2243 = vcombine.high %v2217, %v2225
        %v2245 = vunpack.c.l.s4 1934713408
        %v2246 = vunpack.c.0.s8 %v2245
        %v2247 = vlaneseq
        %v2248 = vshrl.u32 %v2247, 7
        %v2249 = vsub.s32 %v2246, %v2248
        %v2250 = vrot.slane %v2242, %v2249
        %v2252 = vunpack.c.l.s4 1934713408
        %v2253 = vunpack.c.0.s8 %v2252
        %v2254 = vlaneseq
        %v2255 = vshrl.u32 %v2254, 7
        %v2256 = vsub.s32 %v2253, %v2255
        %v2257 = vrot.slane %v2243, %v2256
        %v2258 = vcombine.low %v2233, %v2241
        %v2259 = vcombine.high %v2233, %v2241
        %v2261 = vunpack.c.l.s4 1934713408
        %v2262 = vunpack.c.0.s8 %v2261
        %v2263 = vlaneseq
        %v2264 = vshrl.u32 %v2263, 7
        %v2265 = vsub.s32 %v2262, %v2264
        %v2266 = vrot.slane %v2258, %v2265
        %v2268 = vunpack.c.l.s4 1934713408
        %v2269 = vunpack.c.0.s8 %v2268
        %v2270 = vlaneseq
        %v2271 = vshrl.u32 %v2270, 7
        %v2272 = vsub.s32 %v2269, %v2271
        %v2273 = vrot.slane %v2259, %v2272
        %v2274 = vcombine.low %v2250, %v2266
        %v2275 = vcombine.high %v2250, %v2266
        %v2276 = vcombine.low %v2257, %v2273
        %v2277 = vcombine.high %v2257, %v2273
        %v2278 = vcombine.low %v2182, %v2189
        %v2280 = vunpack.c.l.s4 1983009808
        %v2281 = vunpack.c.0.s8 %v2280
        %v2282 = vlaneseq
        %v2283 = vshrl.u32 %v2282, 7
        %v2284 = vsub.s32 %v2281, %v2283
        %v2285 = vrot.slane %v2278, %v2284
        %v2286 = vcombine.low %v2206, %v2207
        %v2288 = vunpack.c.l.s4 1983009808
        %v2289 = vunpack.c.0.s8 %v2288
        %v2290 = vlaneseq
        %v2291 = vshrl.u32 %v2290, 7
        %v2292 = vsub.s32 %v2289, %v2291
        %v2293 = vrot.slane %v2286, %v2292
        %v2294 = vcombine.low %v2198, %v2205
        %v2296 = vunpack.c.l.s4 1983009808
        %v2297 = vunpack.c.0.s8 %v2296
        %v2298 = vlaneseq
        %v2299 = vshrl.u32 %v2298, 7
        %v2300 = vsub.s32 %v2297, %v2299
        %v2301 = vrot.slane %v2294, %v2300
        %v2302 = vcombine.low %v2208, %v2209
        %v2304 = vunpack.c.l.s4 1983009808
        %v2305 = vunpack.c.0.s8 %v2304
        %v2306 = vlaneseq
        %v2307 = vshrl.u32 %v2306, 7
        %v2308 = vsub.s32 %v2305, %v2307
        %v2309 = vrot.slane %v2302, %v2308
        %v2310 = vcombine.low %v2285, %v2293
        %v2311 = vcombine.high %v2285, %v2293
        %v2313 = vunpack.c.l.s4 1934713408
        %v2314 = vunpack.c.0.s8 %v2313
        %v2315 = vlaneseq
        %v2316 = vshrl.u32 %v2315, 7
        %v2317 = vsub.s32 %v2314, %v2316
        %v2318 = vrot.slane %v2310, %v2317
        %v2320 = vunpack.c.l.s4 1934713408
        %v2321 = vunpack.c.0.s8 %v2320
        %v2322 = vlaneseq
        %v2323 = vshrl.u32 %v2322, 7
        %v2324 = vsub.s32 %v2321, %v2323
        %v2325 = vrot.slane %v2311, %v2324
        %v2326 = vcombine.low %v2301, %v2309
        %v2327 = vcombine.high %v2301, %v2309
        %v2329 = vunpack.c.l.s4 1934713408
        %v2330 = vunpack.c.0.s8 %v2329
        %v2331 = vlaneseq
        %v2332 = vshrl.u32 %v2331, 7
        %v2333 = vsub.s32 %v2330, %v2332
        %v2334 = vrot.slane %v2326, %v2333
        %v2336 = vunpack.c.l.s4 1934713408
        %v2337 = vunpack.c.0.s8 %v2336
        %v2338 = vlaneseq
        %v2339 = vshrl.u32 %v2338, 7
        %v2340 = vsub.s32 %v2337, %v2339
        %v2341 = vrot.slane %v2327, %v2340
        %v2342 = vcombine.low %v2318, %v2334
        %v2343 = vcombine.high %v2318, %v2334
        %v2344 = vcombine.low %v2325, %v2341
        %v2345 = vcombine.high %v2325, %v2341
        %2348 = vrot.lane.b32.xlu0 %v2275, 32
        %v2349 = vpop.permute.xlu0 %2348
        %2350 = vrot.lane.b32.xlu0 %v2343, 32
        %v2351 = vpop.permute.xlu0 %2350
        %2356 = vrot.lane.b32.xlu0 %v2276, 64
        %v2357 = vpop.permute.xlu0 %2356
        %2358 = vrot.lane.b32.xlu0 %v2344, 64
        %v2359 = vpop.permute.xlu0 %2358
        %2364 = vrot.lane.b32.xlu0 %v2277, 96
        %v2365 = vpop.permute.xlu0 %2364
        %2366 = vrot.lane.b32.xlu0 %v2345, 96
        %v2367 = vpop.permute.xlu0 %2366
        %v2370 = vsel %vm1597, %v2274, %v2349
        %v2371 = vsel %vm1597, %v2342, %v2351
        %vm2372 = vcmask 523264
        %v2373 = vsel %vm2372, %v2370, %v2357
        %v2374 = vsel %vm2372, %v2371, %v2359
        %vm2375 = vcmask 785408
        %v2376 = vsel %vm2375, %v2373, %v2365
        %v2377 = vsel %vm2375, %v2374, %v2367
        %v2378 = vpack.c.bf16 %v2377, %v2376
        %v2379 = vld [vmem:[#allocation7] sm:$0xf]
        %v2380 = vld [vmem:[#allocation7 + $0x4] sm:$0xf]
        %v2381 = vld [vmem:[#allocation7 + $0x8] sm:$0xf]
        %v2382 = vld [vmem:[#allocation7 + $0xc] sm:$0xf]
        %v2383 = vld [vmem:[#allocation7 + $0x10] sm:$0xf]
        %v2384 = vld [vmem:[#allocation7 + $0x14] sm:$0xf]
        %v2385 = vld [vmem:[#allocation7 + $0x18] sm:$0xf]
        %v2386 = vld [vmem:[#allocation7 + $0x1c] sm:$0xf]
        %v2387 = vld [vmem:[#allocation7 + $0x20] sm:$0xf]
        %v2388 = vld [vmem:[#allocation7 + $0x24] sm:$0xf]
        %v2389 = vld [vmem:[#allocation7 + $0x28] sm:$0xf]
        %v2390 = vld [vmem:[#allocation7 + $0x2c] sm:$0xf]
        %v2391 = vld [vmem:[#allocation7 + $0x30] sm:$0xf]
        %v2392 = vld [vmem:[#allocation7 + $0x34] sm:$0xf]
        %v2393 = vld [vmem:[#allocation7 + $0x38] sm:$0xf]
        %v2394 = vld [vmem:[#allocation7 + $0x3c] sm:$0xf]
        %v2411 = vunpack.c.l.b16 %v2379
        %v2412 = vunpack.c.l.b16 %v2380
        %v2413 = vunpack.c.l.b16 %v2381
        %v2414 = vunpack.c.l.b16 %v2382
        %v2415 = vunpack.c.l.b16 %v2383
        %v2416 = vunpack.c.l.b16 %v2384
        %v2417 = vunpack.c.l.b16 %v2385
        %v2418 = vunpack.c.l.b16 %v2386
        %v2419 = vunpack.c.l.b16 %v2387
        %v2420 = vunpack.c.l.b16 %v2388
        %v2421 = vunpack.c.l.b16 %v2389
        %v2422 = vunpack.c.l.b16 %v2390
        %v2423 = vunpack.c.l.b16 %v2391
        %v2424 = vunpack.c.l.b16 %v2392
        %v2425 = vunpack.c.l.b16 %v2393
        %v2426 = vunpack.c.l.b16 %v2394
        %v2427 = vpack.c.b16 %v2412, %v2411
        %v2428 = vpack.c.b16 %v2414, %v2413
        %v2429 = vpack.c.b16 %v2416, %v2415
        %v2430 = vpack.c.b16 %v2418, %v2417
        %v2431 = vpack.c.b16 %v2420, %v2419
        %v2432 = vpack.c.b16 %v2422, %v2421
        %v2433 = vpack.c.b16 %v2424, %v2423
        %v2434 = vpack.c.b16 %v2426, %v2425
        %2443 = vmatprep.subr.bf16.mxu0 0
        %2444 = vmatpush1.bf16.msra.mxu0 %v2427
        %2445 = vmatprep.subr.bf16.mxu0 0
        %2446 = vmatpush1.bf16.msra.mxu0 %v2428
        %2447 = vmatprep.subr.bf16.mxu0 0
        %2448 = vmatpush1.bf16.msra.mxu0 %v2429
        %2449 = vmatprep.subr.bf16.mxu0 0
        %2450 = vmatpush1.bf16.msra.mxu0 %v2430
        %2451 = vmatprep.subr.bf16.mxu0 0
        %2452 = vmatpush1.bf16.msra.mxu0 %v2431
        %2453 = vmatprep.subr.bf16.mxu0 0
        %2454 = vmatpush1.bf16.msra.mxu0 %v2432
        %2455 = vmatprep.subr.bf16.mxu0 0
        %2456 = vmatpush1.bf16.msra.mxu0 %v2433
        %2457 = vmatprep.subr.bf16.mxu0 0
        %2458 = vmatpush1.bf16.msra.mxu0 %v2434
        %2459 = vmatprep.subr.bf16.mxu0 0
        %2460 = vmatpush1.bf16.msra.mxu0 0
        %2461 = vmatprep.subr.bf16.mxu0 0
        %2462 = vmatpush1.bf16.msra.mxu0 0
        %2463 = vmatprep.subr.bf16.mxu0 0
        %2464 = vmatpush1.bf16.msra.mxu0 0
        %2465 = vmatprep.subr.bf16.mxu0 0
        %2466 = vmatpush1.bf16.msra.mxu0 0
        %2467 = vmatprep.subr.bf16.mxu0 0
        %2468 = vmatpush1.bf16.msra.mxu0 0
        %2469 = vmatprep.subr.bf16.mxu0 0
        %2470 = vmatpush1.bf16.msra.mxu0 0
        %2471 = vmatprep.subr.bf16.mxu0 0
        %2472 = vmatpush1.bf16.msra.mxu0 0
        %2473 = vmatprep.subr.bf16.mxu0 0
        %2474 = vmatpush1.bf16.msra.mxu0 0
        %2475 = vmatprep.mubr.bf16.mxu0 0
        %2476 = vmatmul.mubr.bf16.gmra.mrb[0].mxu0 %v2378
        %v2477 = vpop.f32.mrb[0].mxu0
        %v2478 = vadd.f32 0.0, %v2477
        %v2479 = vpop.f32.mrb[0].mxu0
        %v2480 = vpop.f32.mrb[0].mxu0
        %v2481 = vadd.f32 0.0, %v2480
        %v2482 = vpop.f32.mrb[0].mxu0
        %2483 = vdwg.mxu0
        %v2484 = vmul.f32 %v2478, %v2478
        %v2485 = vmul.f32 %v2481, %v2481
        %2486 = vadd.xlane.f32.xlu0 %v2484
        %v2487 = vpop.xlane.xlu0 %2486
        %2488 = vadd.xlane.f32.xlu0 %v2485
        %v2489 = vpop.xlane.xlu0 %2488
        %v2490 = vmax.f32 %v2487, 1e-24
        %v2491 = vmax.f32 %v2489, 1e-24
        %v2492 = vrsqrt.pop %v2490
        %v2493 = vrsqrt.pop %v2491
        %v2494 = vmul.f32 %v2478, %v2492
        %v2495 = vmul.f32 %v2481, %v2493
        %2496 = vst [vmem:[%s300] sm:$0xff] %v2494
        %2497 = vst [vmem:[%s300 + $0x8] sm:$0xff] %v2495
        %s2498 = sand.u32 %s142, 1
        %s2499 = scalar_lea.sflag [#allocation4], %s2498
        %s2500 = sand.u32 %s142, 1
        %s2501 = smul.addr %s2500, 16
        %s2502 = scalar_lea.vmem [#allocation11], %s2501
        // Predicated region
        $region61: #{tpu_custom_call.1} parent=39 // pred_check
          %p2503 = pneg %p152
        $region62: #{tpu_custom_call.1} parent=39 // pred_check_branch
          %2505 = sbr.rel (%p2503) target = $region64
        $region63: #{tpu_custom_call.1} parent=39 // pred_region
          %s2507 = ssub.s32 256, 256
          %2508 = vsyncadd %s2499, %s2507
          %s2509 = smul.addr %s24, 2
          %s2510 = smul.addr %s2509, 128
          %s2511 = scalar_lea.hbm %s5, %s2510
          %s2512 = sshll.u32 %s2502, 4
          %s2513 = int_to_ptr.vmem [resolvable:$true] %s2512
          %2518 = dma.vmem_to_hbm [thread:$0]  %s2513, 256, %s2511, %s2499, 128, 128, 8
        $region64: #{tpu_custom_call.1} parent=39 // pred_fallthru
          _
      $region40: #{tpu_custom_call.1} parent=5 // pred_fallthru
        _
      %p2519 = scmp.le.s32.totalorder 2, %s19
      // Predicated region
      $region65: #{tpu_custom_call.1} parent=5 // pred_check
        %p2520 = pneg %p2519
      $region66: #{tpu_custom_call.1} parent=5 // pred_check_branch
        %2522 = sbr.rel (%p2520) target = $region68
      $region67: #{tpu_custom_call.1} parent=5 // pred_region
        %s2523 = ssub.s32 %s19, 2
        // Predicated region
        $region69: #{tpu_custom_call.1} parent=67 // pred_check
          %p2524 = pneg %p158
        $region70: #{tpu_custom_call.1} parent=67 // pred_check_branch
          %2526 = sbr.rel (%p2524) target = $region72
        $region71: #{tpu_custom_call.1} parent=67 // pred_region
          %s2527 = sand.u32 %s143, 1
          %s2528 = scalar_lea.sflag [#allocation4], %s2527
          %s2529 = sand.u32 %s143, 1
          %s2530 = smul.addr %s2529, 16
          %s2531 = scalar_lea.vmem [#allocation11], %s2530
          %2532 = dma.done %s2528, 256
        $region72: #{tpu_custom_call.1} parent=67 // pred_fallthru
          _
      $region68: #{tpu_custom_call.1} parent=5 // pred_fallthru
        _
    $region6: #{tpu_custom_call.1} parent=1 // loop_footer
      %s23 = sadd.s32 1, %s19
    $region7: #{tpu_custom_call.1} parent=1 // loop_footer_branch
      %18 = sbr.rel target = $region3
    $region8: #{tpu_custom_call.1} parent=1 // loop_exit
      _
    %2533 = vsyncpa [#allocation3], 1
    %s2534 = scalar_lea.sflag [#allocation3], 1
    %2535 = vsyncpa %s2534, 1
    %2536 = vsyncpa [#allocation6], 1
    %2537 = vsyncpa [#allocation9], 1
    %2538 = vsyncpa [#allocation4], 1
    %s2539 = scalar_lea.sflag [#allocation4], 1
    %2540 = vsyncpa %s2539, 1

</llo_original>
